<compile_context>
chip_gen: v7x
topology: tpu7x:2x2x1
jax: 0.10.0
libtpu: 0.0.40
codegen_flags: <defaults>
</compile_context>

<pallas_src>
import functools

import jax
import jax.numpy as jnp
import numpy as np
from jax import lax
from jax.experimental import pallas as pl
from jax.experimental.pallas import tpu as pltpu

HID = 100        # hardcoded per-head projection width (nn.Linear(input_dim, 100))
HID_PAD = 128    # lane-tile aligned padding of HID
N_PAD = 128      # sequence / adjacency rows padded 100 -> 128 (full (8,128) tiles)
NEG_INF = -1e30  # large-negative fill for masked softmax columns

# dot_general dimension numbers: contract the LAST dim of both operands (A @ B^T);
# the MXU handles this directly, no XLU transpose needed.
_NT = (((1,), (1,)), ((), ()))


def _mgat_kernel(h_ref, adj_ref, w_ref, b_ref, fcw_ref, fcb_ref, out_ref, wh_scr,
                 *, num_heads, n_valid, batch_tile):
    # Column mask for the softmax: padded rows of W_h are bias-only (nonzero), so
    # padded columns of alpha are garbage and must not enter the max / row-sum.
    col_mask = lax.broadcasted_iota(jnp.int32, (N_PAD, N_PAD), 1) < n_valid

    for bi in range(batch_tile):                    # static unroll, tiny
        h = h_ref[bi]                               # (N_PAD, DP)      bf16
        adj = adj_ref[bi]                           # (N_PAD, N_PAD)   bf16

        # One batched projection for all heads: (N_PAD, DP) @ (DP, H*128).
        # Route through VMEM scratch to bound the vreg live range (item (c)).
        wh_scr[...] = (
            jnp.dot(h, w_ref[...], preferred_element_type=jnp.float32) + b_ref[...]
        ).astype(jnp.bfloat16)

        # Accumulate per-head softmax probabilities; aggregate once afterwards
        # (mean over heads folded algebraically into the row-sum reciprocal).
        p_acc = jnp.zeros((N_PAD, N_PAD), jnp.float32)
        for k in range(num_heads):                  # static unroll: num_heads tiny
            wh = wh_scr[:, k * HID_PAD:(k + 1) * HID_PAD]   # bf16, 128-lane slice
            # t = W_h @ adj^T  and  alpha = t @ W_h^T, both NT dot_generals (bf16).
            t = lax.dot_general(wh, adj, _NT, preferred_element_type=jnp.float32)
            alpha = lax.dot_general(t.astype(jnp.bfloat16), wh, _NT,
                                    preferred_element_type=jnp.float32)
            # Masked softmax over the last axis (only the 100 real columns).
            alpha = jnp.where(col_mask, alpha, NEG_INF)
            alpha = alpha - jnp.max(alpha, axis=-1, keepdims=True)
            e = jnp.exp(alpha)
            e = jnp.where(col_mask, e, 0.0)
            # EUP approx reciprocal; 1/num_heads folded in here (item (d)).
            inv = pl.reciprocal(
                jnp.sum(e, axis=-1, keepdims=True) * num_heads, approx=True)
            p_acc = p_acc + e * inv

        # Single aggregation matmul (head-mean already folded), then fc + ReLU.
        agg = jnp.dot(p_acc.astype(jnp.bfloat16), h,
                      preferred_element_type=jnp.float32)
        out = jnp.dot(agg.astype(jnp.bfloat16), fcw_ref[...],
                      preferred_element_type=jnp.float32) + fcb_ref[...]
        out_ref[bi] = jnp.maximum(out, 0.0)         # (N_PAD, DP) full-tile store


def _pad_axis(x, axis, new_size):
    if new_size == x.shape[axis]:
        return x
    pad = [(0, 0)] * x.ndim
    pad[axis] = (0, new_size - x.shape[axis])
    return jnp.pad(x, pad)


def prepare_mgat_params(params, *, num_heads, input_dim):
    """One-time (hoisted) parameter prep: transpose / zero-pad / cast to bf16."""
    D = input_dim
    DP = max(128, ((D + 127) // 128) * 128)
    HW = num_heads * HID_PAD
    w = jnp.transpose(params["W_weight"], (0, 2, 1))              # (H, D, 100)
    w = _pad_axis(_pad_axis(w, 1, DP), 2, HID_PAD)                # (H, DP, 128)
    w_all = jnp.transpose(w, (1, 0, 2)).reshape(DP, HW)           # (DP, H*128)
    b_all = _pad_axis(params["W_bias"], 1, HID_PAD).reshape(1, HW)
    fcw = _pad_axis(_pad_axis(params["fc_weight"].T, 0, DP), 1, DP)
    fcb = _pad_axis(params["fc_bias"][None, :], 1, DP)
    return {
        "w_all": w_all.astype(jnp.bfloat16),    # MXU operands in bf16
        "b_all": b_all.astype(jnp.float32),     # added post-MXU -> keep f32
        "fcw": fcw.astype(jnp.bfloat16),
        "fcb": fcb.astype(jnp.float32),
    }


@functools.partial(jax.jit, static_argnames=("num_heads", "batch_tile"))
def mgat_attention(h, adj, prepped, *, num_heads, batch_tile=1):
    """MGAT MultiHeadAttention forward: h (B,N,D), adj (B,100,100) -> (B,N,D)."""
    B, N, D = h.shape
    assert adj.shape == (B, N, N) and N == HID, "module requires adj width == 100"
    assert B % batch_tile == 0
    DP = max(128, ((D + 127) // 128) * 128)
    HW = num_heads * HID_PAD

    # TODO(synk): upstream (LayerNorm / sa_prob softmax) could emit pre-padded
    # bf16 h / adj so these per-call pad+cast copies disappear entirely.
    h_p = _pad_axis(_pad_axis(h, 1, N_PAD), 2, DP).astype(jnp.bfloat16)
    adj_p = _pad_axis(_pad_axis(adj, 1, N_PAD), 2, N_PAD).astype(jnp.bfloat16)

    kernel = functools.partial(_mgat_kernel, num_heads=num_heads, n_valid=N,
                               batch_tile=batch_tile)
    out_p = pl.pallas_call(
        kernel,
        out_shape=jax.ShapeDtypeStruct((B, N_PAD, DP), jnp.float32),
        grid=(B // batch_tile,),
        in_specs=[
            pl.BlockSpec((batch_tile, N_PAD, DP), lambda b: (b, 0, 0)),
            pl.BlockSpec((batch_tile, N_PAD, N_PAD), lambda b: (b, 0, 0)),
            pl.BlockSpec((DP, HW), lambda b: (0, 0)),   # constant index maps:
            pl.BlockSpec((1, HW), lambda b: (0, 0)),    # weights fetched once
            pl.BlockSpec((DP, DP), lambda b: (0, 0)),
            pl.BlockSpec((1, DP), lambda b: (0, 0)),
        ],
        out_specs=pl.BlockSpec((batch_tile, N_PAD, DP), lambda b: (b, 0, 0)),
        scratch_shapes=(pltpu.VMEM((N_PAD, HW), jnp.bfloat16),),
        # Parallel batch axis: with batch_tile=1 and B=2 each v7x TensorCore gets
        # one step; raise batch_tile on single-TC v5e/v6e to amortize step cost.
        compiler_params=pltpu.CompilerParams(dimension_semantics=("parallel",)),
    )(h_p, adj_p, prepped["w_all"], prepped["b_all"], prepped["fcw"], prepped["fcb"])
    return out_p[:, :N, :D]                      # drop row / feature padding


def _reference(h, adj, params, num_heads):
    """Pure-JAX re-implementation of the PyTorch MultiHeadAttention forward."""
    adj_t = jnp.swapaxes(adj, 1, 2)
    alphas = []
    for k in range(num_heads):
        wh = h @ params["W_weight"][k].T + params["W_bias"][k]       # (B, N, 100)
        a = (wh @ adj_t) @ jnp.swapaxes(wh, 1, 2)                    # (B, N, N)
        alphas.append(a)
    alpha = jnp.stack(alphas, axis=1)                                # (B, H, N, N)
    alpha = jax.nn.softmax(alpha, axis=-1)
    outs = [alpha[:, k] @ h for k in range(num_heads)]               # each (B, N, D)
    out = jnp.mean(jnp.stack(outs, axis=1), axis=1)                  # (B, N, D)
    out = out @ params["fc_weight"].T + params["fc_bias"]
    return jax.nn.relu(out)


if __name__ == "__main__":
    B = 2
    N = 100                      # sequence / graph size forced by Linear(·, 100)
    input_dim = output_dim = 32  # small stand-in for bert_dim (fc needs in == out)
    num_heads = 2                # ContextEncoder builds MGAT(bert_dim, bert_dim, 2)

    key = jax.random.PRNGKey(0)
    k1, k2, k3, k4, k5, k6 = jax.random.split(key, 6)

    # h plays the role of the (LayerNorm'd, dropout'd) BERT output;
    # adj mimics sa_prob: a row-stochastic softmax attention matrix.
    h = jax.random.normal(k1, (B, N, input_dim), jnp.float32)
    adj = jax.nn.softmax(jax.random.normal(k2, (B, N, N), jnp.float32), axis=-1)

    # Deterministic synthetic parameters (shapes follow the module's __init__).
    params = {
        "W_weight": jax.random.normal(k3, (num_heads, HID, input_dim), jnp.float32) * 0.1,
        "W_bias": jax.random.normal(k4, (num_heads, HID), jnp.float32) * 0.1,
        "fc_weight": jax.random.normal(k5, (output_dim, output_dim), jnp.float32) * 0.1,
        "fc_bias": jax.random.normal(k6, (output_dim,), jnp.float32) * 0.1,
    }

    # Hoisted one-time parameter prep (item (f)).
    prepped = prepare_mgat_params(params, num_heads=num_heads, input_dim=input_dim)

    out = mgat_attention(h, adj, prepped, num_heads=num_heads, batch_tile=1)
    out = jax.block_until_ready(out)
    assert out.shape == (B, N, output_dim)

    ref = jax.block_until_ready(_reference(h, adj, params, num_heads))
    np.testing.assert_allclose(np.asarray(out), np.asarray(ref), rtol=1e-2, atol=1e-2)

    print("KERNEL_OK")
</pallas_src>

<mosaic_0001>
module attributes {stable_mosaic.version = 11 : i64} {
  func.func @_mgat_kernel(%arg0: i32, %arg1: memref<1x128x128xbf16, #tpu.memory_space<vmem>>, %arg2: memref<1x128x128xbf16, #tpu.memory_space<vmem>>, %arg3: memref<128x256xbf16, #tpu.memory_space<vmem>>, %arg4: memref<1x256xf32, #tpu.memory_space<vmem>>, %arg5: memref<128x128xbf16, #tpu.memory_space<vmem>>, %arg6: memref<1x128xf32, #tpu.memory_space<vmem>>, %arg7: memref<1x128x128xf32, #tpu.memory_space<vmem>>, %arg8: memref<128x256xbf16, #tpu.memory_space<vmem>>) attributes {dimension_semantics = [#tpu.dimension_semantics<parallel>], iteration_bounds = array<i64: 2>, scalar_prefetch = 0 : i64, scratch_operands = 1 : i64, tpu.core_type = #tpu.core_type<tc>, window_params = [{transform_indices = @transform_0, window_bounds = array<i64: 1, 128, 128>}, {transform_indices = @transform_1, window_bounds = array<i64: 1, 128, 128>}, {pipeline_mode = #tpu.pipeline_mode<synchronous>, transform_indices = @transform_2, window_bounds = array<i64: 128, 256>}, {pipeline_mode = #tpu.pipeline_mode<synchronous>, transform_indices = @transform_3, window_bounds = array<i64: 1, 256>}, {pipeline_mode = #tpu.pipeline_mode<synchronous>, transform_indices = @transform_4, window_bounds = array<i64: 128, 128>}, {pipeline_mode = #tpu.pipeline_mode<synchronous>, transform_indices = @transform_5, window_bounds = array<i64: 1, 128>}, {transform_indices = @transform_6, window_bounds = array<i64: 1, 128, 128>}]} {
    %0 = tpu.iota {dimensions = array<i32: 1>} : vector<128x128xi32>
    %c100_i32 = arith.constant 100 : i32
    %1 = vector.broadcast %c100_i32 : i32 to vector<128x128xi32>
    %2 = arith.cmpi slt, %0, %1 : vector<128x128xi32>
    %c0 = arith.constant 0 : index
    %c0_0 = arith.constant 0 : index
    %c0_1 = arith.constant 0 : index
    %3 = vector.load %arg1[%c0, %c0_0, %c0_1] : memref<1x128x128xbf16, #tpu.memory_space<vmem>>, vector<1x128x128xbf16>
    %4 = vector.shape_cast %3 : vector<1x128x128xbf16> to vector<128x128xbf16>
    %c0_2 = arith.constant 0 : index
    %c0_3 = arith.constant 0 : index
    %c0_4 = arith.constant 0 : index
    %5 = vector.load %arg2[%c0_2, %c0_3, %c0_4] : memref<1x128x128xbf16, #tpu.memory_space<vmem>>, vector<1x128x128xbf16>
    %6 = vector.shape_cast %5 : vector<1x128x128xbf16> to vector<128x128xbf16>
    %c0_5 = arith.constant 0 : index
    %c0_6 = arith.constant 0 : index
    %7 = vector.load %arg3[%c0_5, %c0_6] : memref<128x256xbf16, #tpu.memory_space<vmem>>, vector<128x256xbf16>
    %cst = arith.constant dense<0.000000e+00> : vector<128x256xf32>
    %8 = tpu.matmul %4, %7, %cst {dimension_numbers = #tpu.dot_dimension_numbers<[1], [0], [0], [1], [0, 0, 1, 1], [], []>} : vector<128x128xbf16>, vector<128x256xbf16>, vector<128x256xf32> -> vector<128x256xf32>
    %c0_7 = arith.constant 0 : index
    %c0_8 = arith.constant 0 : index
    %9 = vector.load %arg4[%c0_7, %c0_8] : memref<1x256xf32, #tpu.memory_space<vmem>>, vector<1x256xf32>
    %10 = vector.broadcast %9 : vector<1x256xf32> to vector<128x256xf32>
    %11 = arith.addf %8, %10 : vector<128x256xf32>
    %12 = arith.truncf %11 : vector<128x256xf32> to vector<128x256xbf16>
    %c0_9 = arith.constant 0 : index
    %c0_10 = arith.constant 0 : index
    %13 = vector.load %arg8[%c0_9, %c0_10] : memref<128x256xbf16, #tpu.memory_space<vmem>>, vector<128x256xbf16>
    tpu.vector_store %arg8[%c0_9, %c0_10], %12 {strides = array<i32>} : memref<128x256xbf16, #tpu.memory_space<vmem>>, vector<128x256xbf16>,
    %cst_11 = arith.constant 0.000000e+00 : f32
    %14 = vector.broadcast %cst_11 : f32 to vector<128x128xf32>
    %c0_12 = arith.constant 0 : index
    %c0_13 = arith.constant 0 : index
    %15 = vector.load %arg8[%c0_12, %c0_13] : memref<128x256xbf16, #tpu.memory_space<vmem>>, vector<128x128xbf16>
    %cst_14 = arith.constant dense<0.000000e+00> : vector<128x128xf32>
    %16 = tpu.matmul %15, %6, %cst_14 {dimension_numbers = #tpu.dot_dimension_numbers<[1], [1], [0], [0], [0, 0, 1, 0], [], []>} : vector<128x128xbf16>, vector<128x128xbf16>, vector<128x128xf32> -> vector<128x128xf32>
    %17 = arith.truncf %16 : vector<128x128xf32> to vector<128x128xbf16>
    %cst_15 = arith.constant dense<0.000000e+00> : vector<128x128xf32>
    %18 = tpu.matmul %17, %15, %cst_15 {dimension_numbers = #tpu.dot_dimension_numbers<[1], [1], [0], [0], [0, 0, 1, 0], [], []>} : vector<128x128xbf16>, vector<128x128xbf16>, vector<128x128xf32> -> vector<128x128xf32>
    %cst_16 = arith.constant -1.000000e+30 : f32
    %19 = vector.broadcast %cst_16 : f32 to vector<128x128xf32>
    %20 = arith.select %2, %18, %19 : vector<128x128xi1>, vector<128x128xf32>
    %cst_17 = arith.constant dense<0xFF800000> : vector<128xf32>
    %21 = vector.multi_reduction <maximumf>, %20, %cst_17 [1] : vector<128x128xf32> to vector<128xf32>
    %22 = vector.shape_cast %21 : vector<128xf32> to vector<128x1xf32>
    %23 = vector.broadcast %22 : vector<128x1xf32> to vector<128x128xf32>
    %24 = arith.subf %20, %23 : vector<128x128xf32>
    %25 = math.exp %24 : vector<128x128xf32>
    %cst_18 = arith.constant 0.000000e+00 : f32
    %26 = vector.broadcast %cst_18 : f32 to vector<128x128xf32>
    %27 = arith.select %2, %25, %26 : vector<128x128xi1>, vector<128x128xf32>
    %cst_19 = arith.constant dense<0.000000e+00> : vector<128xf32>
    %28 = vector.multi_reduction <add>, %27, %cst_19 [1] : vector<128x128xf32> to vector<128xf32>
    %29 = vector.shape_cast %28 : vector<128xf32> to vector<128x1xf32>
    %cst_20 = arith.constant 2.000000e+00 : f32
    %30 = vector.broadcast %cst_20 : f32 to vector<128x1xf32>
    %31 = arith.mulf %29, %30 : vector<128x1xf32>
    %32 = tpu.reciprocal %31 {approx = true} : vector<128x1xf32> -> vector<128x1xf32>
    %33 = vector.broadcast %32 : vector<128x1xf32> to vector<128x128xf32>
    %34 = arith.mulf %27, %33 : vector<128x128xf32>
    %35 = arith.addf %14, %34 : vector<128x128xf32>
    %c0_21 = arith.constant 0 : index
    %c128 = arith.constant 128 : index
    %36 = vector.load %arg8[%c0_21, %c128] : memref<128x256xbf16, #tpu.memory_space<vmem>>, vector<128x128xbf16>
    %cst_22 = arith.constant dense<0.000000e+00> : vector<128x128xf32>
    %37 = tpu.matmul %36, %6, %cst_22 {dimension_numbers = #tpu.dot_dimension_numbers<[1], [1], [0], [0], [0, 0, 1, 0], [], []>} : vector<128x128xbf16>, vector<128x128xbf16>, vector<128x128xf32> -> vector<128x128xf32>
    %38 = arith.truncf %37 : vector<128x128xf32> to vector<128x128xbf16>
    %cst_23 = arith.constant dense<0.000000e+00> : vector<128x128xf32>
    %39 = tpu.matmul %38, %36, %cst_23 {dimension_numbers = #tpu.dot_dimension_numbers<[1], [1], [0], [0], [0, 0, 1, 0], [], []>} : vector<128x128xbf16>, vector<128x128xbf16>, vector<128x128xf32> -> vector<128x128xf32>
    %cst_24 = arith.constant -1.000000e+30 : f32
    %40 = vector.broadcast %cst_24 : f32 to vector<128x128xf32>
    %41 = arith.select %2, %39, %40 : vector<128x128xi1>, vector<128x128xf32>
    %cst_25 = arith.constant dense<0xFF800000> : vector<128xf32>
    %42 = vector.multi_reduction <maximumf>, %41, %cst_25 [1] : vector<128x128xf32> to vector<128xf32>
    %43 = vector.shape_cast %42 : vector<128xf32> to vector<128x1xf32>
    %44 = vector.broadcast %43 : vector<128x1xf32> to vector<128x128xf32>
    %45 = arith.subf %41, %44 : vector<128x128xf32>
    %46 = math.exp %45 : vector<128x128xf32>
    %cst_26 = arith.constant 0.000000e+00 : f32
    %47 = vector.broadcast %cst_26 : f32 to vector<128x128xf32>
    %48 = arith.select %2, %46, %47 : vector<128x128xi1>, vector<128x128xf32>
    %cst_27 = arith.constant dense<0.000000e+00> : vector<128xf32>
    %49 = vector.multi_reduction <add>, %48, %cst_27 [1] : vector<128x128xf32> to vector<128xf32>
    %50 = vector.shape_cast %49 : vector<128xf32> to vector<128x1xf32>
    %cst_28 = arith.constant 2.000000e+00 : f32
    %51 = vector.broadcast %cst_28 : f32 to vector<128x1xf32>
    %52 = arith.mulf %50, %51 : vector<128x1xf32>
    %53 = tpu.reciprocal %52 {approx = true} : vector<128x1xf32> -> vector<128x1xf32>
    %54 = vector.broadcast %53 : vector<128x1xf32> to vector<128x128xf32>
    %55 = arith.mulf %48, %54 : vector<128x128xf32>
    %56 = arith.addf %35, %55 : vector<128x128xf32>
    %57 = arith.truncf %56 : vector<128x128xf32> to vector<128x128xbf16>
    %cst_29 = arith.constant dense<0.000000e+00> : vector<128x128xf32>
    %58 = tpu.matmul %57, %4, %cst_29 {dimension_numbers = #tpu.dot_dimension_numbers<[1], [0], [0], [1], [0, 0, 1, 1], [], []>} : vector<128x128xbf16>, vector<128x128xbf16>, vector<128x128xf32> -> vector<128x128xf32>
    %59 = arith.truncf %58 : vector<128x128xf32> to vector<128x128xbf16>
    %c0_30 = arith.constant 0 : index
    %c0_31 = arith.constant 0 : index
    %60 = vector.load %arg5[%c0_30, %c0_31] : memref<128x128xbf16, #tpu.memory_space<vmem>>, vector<128x128xbf16>
    %cst_32 = arith.constant dense<0.000000e+00> : vector<128x128xf32>
    %61 = tpu.matmul %59, %60, %cst_32 {dimension_numbers = #tpu.dot_dimension_numbers<[1], [0], [0], [1], [0, 0, 1, 1], [], []>} : vector<128x128xbf16>, vector<128x128xbf16>, vector<128x128xf32> -> vector<128x128xf32>
    %c0_33 = arith.constant 0 : index
    %c0_34 = arith.constant 0 : index
    %62 = vector.load %arg6[%c0_33, %c0_34] : memref<1x128xf32, #tpu.memory_space<vmem>>, vector<1x128xf32>
    %63 = vector.broadcast %62 : vector<1x128xf32> to vector<128x128xf32>
    %64 = arith.addf %61, %63 : vector<128x128xf32>
    %cst_35 = arith.constant 0.000000e+00 : f32
    %65 = vector.broadcast %cst_35 : f32 to vector<128x128xf32>
    %66 = arith.maximumf %64, %65 : vector<128x128xf32>
    %c0_36 = arith.constant 0 : index
    %c0_37 = arith.constant 0 : index
    %c0_38 = arith.constant 0 : index
    %67 = vector.load %arg7[%c0_36, %c0_37, %c0_38] : memref<1x128x128xf32, #tpu.memory_space<vmem>>, vector<1x128x128xf32>
    %68 = vector.shape_cast %67 : vector<1x128x128xf32> to vector<128x128xf32>
    %69 = vector.shape_cast %66 : vector<128x128xf32> to vector<1x128x128xf32>
    tpu.vector_store %arg7[%c0_36, %c0_37, %c0_38], %69 {strides = array<i32>} : memref<1x128x128xf32, #tpu.memory_space<vmem>>, vector<1x128x128xf32>,
    return
  }
  func.func @transform_0(%arg0: i32) -> (i32, i32, i32) {
    %c0_i32 = arith.constant 0 : i32
    %c0_i32_0 = arith.constant 0 : i32
    %c0_i32_1 = arith.constant 0 : i32
    return %arg0, %c0_i32, %c0_i32_0 : i32, i32, i32
  }
  func.func @transform_1(%arg0: i32) -> (i32, i32, i32) {
    %c0_i32 = arith.constant 0 : i32
    %c0_i32_0 = arith.constant 0 : i32
    %c0_i32_1 = arith.constant 0 : i32
    return %arg0, %c0_i32, %c0_i32_0 : i32, i32, i32
  }
  func.func @transform_2(%arg0: i32) -> (i32, i32) {
    %c0_i32 = arith.constant 0 : i32
    %c0_i32_0 = arith.constant 0 : i32
    %c0_i32_1 = arith.constant 0 : i32
    return %c0_i32, %c0_i32_0 : i32, i32
  }
  func.func @transform_3(%arg0: i32) -> (i32, i32) {
    %c0_i32 = arith.constant 0 : i32
    %c0_i32_0 = arith.constant 0 : i32
    %c0_i32_1 = arith.constant 0 : i32
    return %c0_i32, %c0_i32_0 : i32, i32
  }
  func.func @transform_4(%arg0: i32) -> (i32, i32) {
    %c0_i32 = arith.constant 0 : i32
    %c0_i32_0 = arith.constant 0 : i32
    %c0_i32_1 = arith.constant 0 : i32
    return %c0_i32, %c0_i32_0 : i32, i32
  }
  func.func @transform_5(%arg0: i32) -> (i32, i32) {
    %c0_i32 = arith.constant 0 : i32
    %c0_i32_0 = arith.constant 0 : i32
    %c0_i32_1 = arith.constant 0 : i32
    return %c0_i32, %c0_i32_0 : i32, i32
  }
  func.func @transform_6(%arg0: i32) -> (i32, i32, i32) {
    %c0_i32 = arith.constant 0 : i32
    %c0_i32_0 = arith.constant 0 : i32
    %c0_i32_1 = arith.constant 0 : i32
    return %arg0, %c0_i32, %c0_i32_0 : i32, i32, i32
  }
}

</mosaic_0001>

<llo_original>
// kernel: mgat_attention.1
$region0: #{mgat_attention.1}
  #allocation0 [shape = 'u32[]', space=smem, size = 0x4, offset = 0x4, fixed_abs, tag = 'smem constant byte address 0x4 - core index']
  #allocation1 [shape = 'u32[144,128]{1,0:T(1,128)}', space=vmem, size = 0x12000, scoped, tag = 'internal scratch']
  #allocation2 [shape = 'bf16[128,256]{1,0:T(16,128)(2,1)}', space=vmem, size = 0x10000, scoped, tag = 'scratch operand']
  %s0 = inlined_call_operand.vmem [shape: bf16[2,128,128], index: 0, kind: input, shape index: {}]
  %s1 = inlined_call_operand.vmem [shape: bf16[2,128,128], index: 1, kind: input, shape index: {}]
  %s2 = inlined_call_operand.vmem [shape: bf16[128,256], index: 2, kind: input, shape index: {}]
  %s3 = inlined_call_operand.vmem [shape: f32[1,256], index: 3, kind: input, shape index: {}]
  %s4 = inlined_call_operand.vmem [shape: bf16[128,128], index: 4, kind: input, shape index: {}]
  %s5 = inlined_call_operand.vmem [shape: f32[1,128], index: 5, kind: input, shape index: {}]
  %s6 = inlined_call_operand.vmem [shape: f32[2,128,128], index: 6, kind: output, shape index: {}]
  %s7 = sld [smem:[#allocation0]]
  $region57: #{mgat_attention.1} parent=0
    _
  %s9 = ssub.s32 1, %s7
  %s10 = scalar_select 0, %s9, %s7
  loop: start=0, step=1, limit=4
  $region2: #{mgat_attention.1} parent=0 // loop_pre_header
    _
  $region3: #{mgat_attention.1} parent=0 // loop_header
    %s12 = sphi 0, %s16
    %p13 = scmp.ge.s32.totalorder %s12, 4
    %s22 = sphi 0, %s24
    %s25 = sphi 0, %s22
    %s26 = sphi 0, %s25
    %s42 = sphi 0, %s26
    %s48 = sphi 0, %s50
    %s51 = sphi 0, %s48
    %s52 = sphi 0, %s51
    %s68 = sphi 0, %s52
    %s72 = sphi 0, %s72
    %s74 = sphi 0, %s72
    %s75 = sphi 0, %s74
    %s89 = sphi 0, %s75
    %s93 = sphi 0, %s93
    %s95 = sphi 0, %s93
    %s96 = sphi 0, %s95
    %s110 = sphi 0, %s96
    %s114 = sphi 0, %s114
    %s116 = sphi 0, %s114
    %s117 = sphi 0, %s116
    %s131 = sphi 0, %s117
    %s135 = sphi 0, %s135
    %s137 = sphi 0, %s135
    %s138 = sphi 0, %s137
    %s152 = sphi 0, %s138
    %s158 = sphi 0, %s160
    %s161 = sphi 0, %s158
    %s162 = sphi 0, %s161
    %s178 = sphi 0, %s162
  $region4: #{mgat_attention.1} parent=0 // loop_header_branch
    %15 = sbr.rel (%p13) target = $region8
  $region5: #{mgat_attention.1} parent=0 // loop_body
    %s17 = ssub.s32 %s12, 1
    %s18 = ssub.s32 %s12, 2
    %s19 = sadd.s32 %s12, 1
    %s20 = ssub.s32 %s12, %s19
    %p21 = scmp.eq.s32.totalorder %s20, 0
    %s23 = sadd.s32 %s22, 1
    %s24 = scalar_select %p21, %s22, %s23
    %p27 = pneg %p21
    %p28 = scmp.eq.s32.totalorder %s12, 1
    %p29 = por %p27, %p28
    %p30 = scmp.ne.s32.totalorder %s22, %s25
    %p31 = scmp.eq.s32.totalorder %s12, 0
    %p32 = por %p30, %p31
    %p33 = scmp.ne.s32.totalorder %s22, %s25
    %p34 = scmp.eq.s32.totalorder %s17, 1
    %p35 = por %p33, %p34
    %p36 = scmp.ne.s32.totalorder %s25, %s26
    %p37 = scmp.eq.s32.totalorder %s17, 0
    %p38 = por %p36, %p37
    %p39 = scmp.ne.s32.totalorder %s25, %s26
    %p40 = scmp.eq.s32.totalorder %s18, 1
    %p41 = por %p39, %p40
    %p43 = scmp.ne.s32.totalorder %s26, %s42
    %p44 = scmp.eq.s32.totalorder %s18, 0
    %p45 = por %p43, %p44
    %s46 = ssub.s32 %s12, %s19
    %p47 = scmp.eq.s32.totalorder %s46, 0
    %s49 = sadd.s32 %s48, 1
    %s50 = scalar_select %p47, %s48, %s49
    %p53 = pneg %p47
    %p54 = scmp.eq.s32.totalorder %s12, 1
    %p55 = por %p53, %p54
    %p56 = scmp.ne.s32.totalorder %s48, %s51
    %p57 = scmp.eq.s32.totalorder %s12, 0
    %p58 = por %p56, %p57
    %p59 = scmp.ne.s32.totalorder %s48, %s51
    %p60 = scmp.eq.s32.totalorder %s17, 1
    %p61 = por %p59, %p60
    %p62 = scmp.ne.s32.totalorder %s51, %s52
    %p63 = scmp.eq.s32.totalorder %s17, 0
    %p64 = por %p62, %p63
    %p65 = scmp.ne.s32.totalorder %s51, %s52
    %p66 = scmp.eq.s32.totalorder %s18, 1
    %p67 = por %p65, %p66
    %p69 = scmp.ne.s32.totalorder %s52, %s68
    %p70 = scmp.eq.s32.totalorder %s18, 0
    %p71 = por %p69, %p70
    %s73 = sadd.s32 %s72, 1
    %p76 = scmp.eq.s32.totalorder %s12, 1
    %p77 = scmp.ne.s32.totalorder %s72, %s74
    %p78 = scmp.eq.s32.totalorder %s12, 0
    %p79 = por %p77, %p78
    %p80 = scmp.ne.s32.totalorder %s72, %s74
    %p81 = scmp.eq.s32.totalorder %s17, 1
    %p82 = por %p80, %p81
    %p83 = scmp.ne.s32.totalorder %s74, %s75
    %p84 = scmp.eq.s32.totalorder %s17, 0
    %p85 = por %p83, %p84
    %p86 = scmp.ne.s32.totalorder %s74, %s75
    %p87 = scmp.eq.s32.totalorder %s18, 1
    %p88 = por %p86, %p87
    %p90 = scmp.ne.s32.totalorder %s75, %s89
    %p91 = scmp.eq.s32.totalorder %s18, 0
    %p92 = por %p90, %p91
    %s94 = sadd.s32 %s93, 1
    %p97 = scmp.eq.s32.totalorder %s12, 1
    %p98 = scmp.ne.s32.totalorder %s93, %s95
    %p99 = scmp.eq.s32.totalorder %s12, 0
    %p100 = por %p98, %p99
    %p101 = scmp.ne.s32.totalorder %s93, %s95
    %p102 = scmp.eq.s32.totalorder %s17, 1
    %p103 = por %p101, %p102
    %p104 = scmp.ne.s32.totalorder %s95, %s96
    %p105 = scmp.eq.s32.totalorder %s17, 0
    %p106 = por %p104, %p105
    %p107 = scmp.ne.s32.totalorder %s95, %s96
    %p108 = scmp.eq.s32.totalorder %s18, 1
    %p109 = por %p107, %p108
    %p111 = scmp.ne.s32.totalorder %s96, %s110
    %p112 = scmp.eq.s32.totalorder %s18, 0
    %p113 = por %p111, %p112
    %s115 = sadd.s32 %s114, 1
    %p118 = scmp.eq.s32.totalorder %s12, 1
    %p119 = scmp.ne.s32.totalorder %s114, %s116
    %p120 = scmp.eq.s32.totalorder %s12, 0
    %p121 = por %p119, %p120
    %p122 = scmp.ne.s32.totalorder %s114, %s116
    %p123 = scmp.eq.s32.totalorder %s17, 1
    %p124 = por %p122, %p123
    %p125 = scmp.ne.s32.totalorder %s116, %s117
    %p126 = scmp.eq.s32.totalorder %s17, 0
    %p127 = por %p125, %p126
    %p128 = scmp.ne.s32.totalorder %s116, %s117
    %p129 = scmp.eq.s32.totalorder %s18, 1
    %p130 = por %p128, %p129
    %p132 = scmp.ne.s32.totalorder %s117, %s131
    %p133 = scmp.eq.s32.totalorder %s18, 0
    %p134 = por %p132, %p133
    %s136 = sadd.s32 %s135, 1
    %p139 = scmp.eq.s32.totalorder %s12, 1
    %p140 = scmp.ne.s32.totalorder %s135, %s137
    %p141 = scmp.eq.s32.totalorder %s12, 0
    %p142 = por %p140, %p141
    %p143 = scmp.ne.s32.totalorder %s135, %s137
    %p144 = scmp.eq.s32.totalorder %s17, 1
    %p145 = por %p143, %p144
    %p146 = scmp.ne.s32.totalorder %s137, %s138
    %p147 = scmp.eq.s32.totalorder %s17, 0
    %p148 = por %p146, %p147
    %p149 = scmp.ne.s32.totalorder %s137, %s138
    %p150 = scmp.eq.s32.totalorder %s18, 1
    %p151 = por %p149, %p150
    %p153 = scmp.ne.s32.totalorder %s138, %s152
    %p154 = scmp.eq.s32.totalorder %s18, 0
    %p155 = por %p153, %p154
    %s156 = ssub.s32 %s12, %s19
    %p157 = scmp.eq.s32.totalorder %s156, 0
    %s159 = sadd.s32 %s158, 1
    %s160 = scalar_select %p157, %s158, %s159
    %p163 = pneg %p157
    %p164 = scmp.eq.s32.totalorder %s12, 1
    %p165 = por %p163, %p164
    %p166 = scmp.ne.s32.totalorder %s158, %s161
    %p167 = scmp.eq.s32.totalorder %s12, 0
    %p168 = por %p166, %p167
    %p169 = scmp.ne.s32.totalorder %s158, %s161
    %p170 = scmp.eq.s32.totalorder %s17, 1
    %p171 = por %p169, %p170
    %p172 = scmp.ne.s32.totalorder %s161, %s162
    %p173 = scmp.eq.s32.totalorder %s17, 0
    %p174 = por %p172, %p173
    %p175 = scmp.ne.s32.totalorder %s161, %s162
    %p176 = scmp.eq.s32.totalorder %s18, 1
    %p177 = por %p175, %p176
    %p179 = scmp.ne.s32.totalorder %s162, %s178
    %p180 = scmp.eq.s32.totalorder %s18, 0
    %p181 = por %p179, %p180
    %p182 = scmp.le.s32.totalorder 1, %s12
    %p183 = scmp.lt.s32.totalorder %s12, 3
    %p184 = pnand %p182, %p183
    %p185 = pneg %p184
    // Predicated region
    $region9: #{mgat_attention.1} parent=5 // pred_check
      _
    $region10: #{mgat_attention.1} parent=5 // pred_check_branch
      %187 = sbr.rel (%p184) target = $region12
    $region11: #{mgat_attention.1} parent=5 // pred_region
      %s188 = ssub.s32 %s12, 1
      // Predicated region
      $region13: #{mgat_attention.1} parent=11 // pred_check
        %p189 = pneg %p85
      $region14: #{mgat_attention.1} parent=11 // pred_check_branch
        %191 = sbr.rel (%p189) target = $region16
      $region15: #{mgat_attention.1} parent=11 // pred_region
        _
      $region16: #{mgat_attention.1} parent=11 // pred_fallthru
        _
      // Predicated region
      $region17: #{mgat_attention.1} parent=11 // pred_check
        %p192 = pneg %p106
      $region18: #{mgat_attention.1} parent=11 // pred_check_branch
        %194 = sbr.rel (%p192) target = $region20
      $region19: #{mgat_attention.1} parent=11 // pred_region
        _
      $region20: #{mgat_attention.1} parent=11 // pred_fallthru
        _
      // Predicated region
      $region21: #{mgat_attention.1} parent=11 // pred_check
        %p195 = pneg %p127
      $region22: #{mgat_attention.1} parent=11 // pred_check_branch
        %197 = sbr.rel (%p195) target = $region24
      $region23: #{mgat_attention.1} parent=11 // pred_region
        _
      $region24: #{mgat_attention.1} parent=11 // pred_fallthru
        _
      // Predicated region
      $region25: #{mgat_attention.1} parent=11 // pred_check
        %p198 = pneg %p148
      $region26: #{mgat_attention.1} parent=11 // pred_check_branch
        %200 = sbr.rel (%p198) target = $region28
      $region27: #{mgat_attention.1} parent=11 // pred_region
        _
      $region28: #{mgat_attention.1} parent=11 // pred_fallthru
        _
    $region12: #{mgat_attention.1} parent=5 // pred_fallthru
      _
    %p201 = scmp.lt.s32.totalorder %s12, 2
    // Predicated region
    $region29: #{mgat_attention.1} parent=5 // pred_check
      %p202 = pneg %p201
    $region30: #{mgat_attention.1} parent=5 // pred_check_branch
      %204 = sbr.rel (%p202) target = $region32
    $region31: #{mgat_attention.1} parent=5 // pred_region
      // Predicated region
      $region33: #{mgat_attention.1} parent=31 // pred_check
        %p205 = pneg %p32
      $region34: #{mgat_attention.1} parent=31 // pred_check_branch
        %207 = sbr.rel (%p205) target = $region36
      $region35: #{mgat_attention.1} parent=31 // pred_region
        %p208 = scmp.lt.s32.totalorder %s12, 1
        %s209 = scalar_select %p208, %s12, 1
        %s210 = smul.addr %s209, 16
        %s211 = smul.addr %s210, 4
        %s212 = scalar_lea.vmem %s0, %s211
      $region36: #{mgat_attention.1} parent=31 // pred_fallthru
        _
      // Predicated region
      $region37: #{mgat_attention.1} parent=31 // pred_check
        %p213 = pneg %p58
      $region38: #{mgat_attention.1} parent=31 // pred_check_branch
        %215 = sbr.rel (%p213) target = $region40
      $region39: #{mgat_attention.1} parent=31 // pred_region
        %p216 = scmp.lt.s32.totalorder %s12, 1
        %s217 = scalar_select %p216, %s12, 1
        %s218 = smul.addr %s217, 16
        %s219 = smul.addr %s218, 4
        %s220 = scalar_lea.vmem %s1, %s219
      $region40: #{mgat_attention.1} parent=31 // pred_fallthru
        _
    $region32: #{mgat_attention.1} parent=5 // pred_fallthru
      _
    %p221 = scmp.le.s32.totalorder 1, %s12
    %p222 = scmp.lt.s32.totalorder %s12, 3
    %p223 = pnand %p221, %p222
    %p224 = pneg %p223
    // Predicated region
    $region41: #{mgat_attention.1} parent=5 // pred_check
      _
    $region42: #{mgat_attention.1} parent=5 // pred_check_branch
      %226 = sbr.rel (%p223) target = $region44
    $region43: #{mgat_attention.1} parent=5 // pred_region
      %s227 = ssub.s32 %s12, 1
      %p228 = scmp.lt.s32.totalorder %s17, 1
      %s229 = scalar_select %p228, %s17, 1
      %s230 = smul.addr %s229, 16
      %s231 = smul.addr %s230, 4
      %s232 = scalar_lea.vmem %s0, %s231
      %p233 = pneg %p38
      %p234 = pneg %p35
      %p235 = scmp.lt.s32.totalorder %s17, 1
      %s236 = scalar_select %p235, %s17, 1
      %s237 = smul.addr %s236, 16
      %s238 = smul.addr %s237, 4
      %s239 = scalar_lea.vmem %s1, %s238
      %p240 = pneg %p64
      %p241 = pneg %p61
      %p242 = pneg %p85
      %p243 = pneg %p82
      %p244 = pneg %p106
      %p245 = pneg %p103
      %p246 = pneg %p127
      %p247 = pneg %p124
      %p248 = pneg %p148
      %p249 = pneg %p145
      %p250 = pneg %p174
      %p251 = pneg %p171
      %p252 = scmp.lt.s32.totalorder %s17, 1
      %s253 = scalar_select %p252, %s17, 1
      %s254 = smul.addr %s253, 16
      %s255 = smul.addr %s254, 8
      %s256 = scalar_lea.vmem %s6, %s255
      %p257 = scmp.lt.s32.totalorder %s17, 1
      %s258 = scalar_select %p257, %s17, 1
      %s259 = smul.addr %s258, 16
      %s260 = smul.addr %s259, 4
      %s261 = scalar_lea.vmem %s0, %s260
      %p262 = scmp.lt.s32.totalorder %s17, 1
      %s263 = scalar_select %p262, %s17, 1
      %s264 = smul.addr %s263, 16
      %s265 = smul.addr %s264, 4
      %s266 = scalar_lea.vmem %s1, %s265
      %p267 = scmp.lt.s32.totalorder %s17, 1
      %s268 = scalar_select %p267, %s17, 1
      %s269 = smul.addr %s268, 16
      %s270 = smul.addr %s269, 8
      %s271 = scalar_lea.vmem %s6, %s270
      %v273 = vlaneseq
      %v274 = vand.u32 %v273, 127
      %vm275 = vcmp.lt.s32.totalorder %v274, 100
      %v276 = vld [vmem:[%s261] sm:$0xf]
      %v277 = vld [vmem:[%s261 + $0x4] sm:$0xf]
      %v278 = vld [vmem:[%s261 + $0x8] sm:$0xf]
      %v279 = vld [vmem:[%s261 + $0xc] sm:$0xf]
      %v280 = vld [vmem:[%s261 + $0x10] sm:$0xf]
      %v281 = vld [vmem:[%s261 + $0x14] sm:$0xf]
      %v282 = vld [vmem:[%s261 + $0x18] sm:$0xf]
      %v283 = vld [vmem:[%s261 + $0x1c] sm:$0xf]
      %v284 = vld [vmem:[%s261 + $0x20] sm:$0xf]
      %v285 = vld [vmem:[%s261 + $0x24] sm:$0xf]
      %v286 = vld [vmem:[%s261 + $0x28] sm:$0xf]
      %v287 = vld [vmem:[%s261 + $0x2c] sm:$0xf]
      %v288 = vld [vmem:[%s261 + $0x30] sm:$0xf]
      %v289 = vld [vmem:[%s261 + $0x34] sm:$0xf]
      %v290 = vld [vmem:[%s261 + $0x38] sm:$0xf]
      %v291 = vld [vmem:[%s261 + $0x3c] sm:$0xf]
      %v292 = vld [vmem:[%s266] sm:$0xf]
      %v293 = vld [vmem:[%s266 + $0x4] sm:$0xf]
      %v294 = vld [vmem:[%s266 + $0x8] sm:$0xf]
      %v295 = vld [vmem:[%s266 + $0xc] sm:$0xf]
      %v296 = vld [vmem:[%s266 + $0x10] sm:$0xf]
      %v297 = vld [vmem:[%s266 + $0x14] sm:$0xf]
      %v298 = vld [vmem:[%s266 + $0x18] sm:$0xf]
      %v299 = vld [vmem:[%s266 + $0x1c] sm:$0xf]
      %v300 = vld [vmem:[%s266 + $0x20] sm:$0xf]
      %v301 = vld [vmem:[%s266 + $0x24] sm:$0xf]
      %v302 = vld [vmem:[%s266 + $0x28] sm:$0xf]
      %v303 = vld [vmem:[%s266 + $0x2c] sm:$0xf]
      %v304 = vld [vmem:[%s266 + $0x30] sm:$0xf]
      %v305 = vld [vmem:[%s266 + $0x34] sm:$0xf]
      %v306 = vld [vmem:[%s266 + $0x38] sm:$0xf]
      %v307 = vld [vmem:[%s266 + $0x3c] sm:$0xf]
      %v308 = vld [vmem:[%s2] sm:$0xff]
      %v309 = vld [vmem:[%s2 + $0x8] sm:$0xff]
      %v310 = vld [vmem:[%s2 + $0x10] sm:$0xff]
      %v311 = vld [vmem:[%s2 + $0x18] sm:$0xff]
      %v312 = vld [vmem:[%s2 + $0x20] sm:$0xff]
      %v313 = vld [vmem:[%s2 + $0x28] sm:$0xff]
      %v314 = vld [vmem:[%s2 + $0x30] sm:$0xff]
      %v315 = vld [vmem:[%s2 + $0x38] sm:$0xff]
      %v316 = vld [vmem:[%s2 + $0x40] sm:$0xff]
      %v317 = vld [vmem:[%s2 + $0x48] sm:$0xff]
      %v318 = vld [vmem:[%s2 + $0x50] sm:$0xff]
      %v319 = vld [vmem:[%s2 + $0x58] sm:$0xff]
      %v320 = vld [vmem:[%s2 + $0x60] sm:$0xff]
      %v321 = vld [vmem:[%s2 + $0x68] sm:$0xff]
      %v322 = vld [vmem:[%s2 + $0x70] sm:$0xff]
      %v323 = vld [vmem:[%s2 + $0x78] sm:$0xff]
      %v324 = vld [vmem:[%s3] sm:$0x3]
      %v326 = vlaneseq
      %v327 = vshrl.u32 %v326, 7
      %v328 = vsub.s32 0, %v327
      %v329 = vrot.slane %v324, %v328
      %v330 = vlaneseq
      %v331 = vshrl.u32 %v330, 7
      %v332 = vsub.s32 1, %v331
      %v333 = vrot.slane %v324, %v332
      %v352 = vunpack.c.l.b16 %v276
      %v353 = vunpack.c.l.b16 %v277
      %v354 = vunpack.c.l.b16 %v278
      %v355 = vunpack.c.l.b16 %v279
      %v356 = vunpack.c.l.b16 %v280
      %v357 = vunpack.c.l.b16 %v281
      %v358 = vunpack.c.l.b16 %v282
      %v359 = vunpack.c.l.b16 %v283
      %v360 = vunpack.c.l.b16 %v284
      %v361 = vunpack.c.l.b16 %v285
      %v362 = vunpack.c.l.b16 %v286
      %v363 = vunpack.c.l.b16 %v287
      %v364 = vunpack.c.l.b16 %v288
      %v365 = vunpack.c.l.b16 %v289
      %v366 = vunpack.c.l.b16 %v290
      %v367 = vunpack.c.l.b16 %v291
      %v368 = vpack.c.b16 %v353, %v352
      %v369 = vpack.c.b16 %v355, %v354
      %v370 = vpack.c.b16 %v357, %v356
      %v371 = vpack.c.b16 %v359, %v358
      %v372 = vpack.c.b16 %v361, %v360
      %v373 = vpack.c.b16 %v363, %v362
      %v374 = vpack.c.b16 %v365, %v364
      %v375 = vpack.c.b16 %v367, %v366
      %v400 = vunpack.c.l.b16 %v308
      %v401 = vunpack.c.h.b16 %v308
      %v402 = vunpack.c.l.b16 %v309
      %v403 = vunpack.c.h.b16 %v309
      %v404 = vunpack.c.l.b16 %v310
      %v405 = vunpack.c.h.b16 %v310
      %v406 = vunpack.c.l.b16 %v311
      %v407 = vunpack.c.h.b16 %v311
      %v408 = vunpack.c.l.b16 %v312
      %v409 = vunpack.c.h.b16 %v312
      %v410 = vunpack.c.l.b16 %v313
      %v411 = vunpack.c.h.b16 %v313
      %v412 = vunpack.c.l.b16 %v314
      %v413 = vunpack.c.h.b16 %v314
      %v414 = vunpack.c.l.b16 %v315
      %v415 = vunpack.c.h.b16 %v315
      %v416 = vunpack.c.l.b16 %v316
      %v417 = vunpack.c.h.b16 %v316
      %v418 = vunpack.c.l.b16 %v317
      %v419 = vunpack.c.h.b16 %v317
      %v420 = vunpack.c.l.b16 %v318
      %v421 = vunpack.c.h.b16 %v318
      %v422 = vunpack.c.l.b16 %v319
      %v423 = vunpack.c.h.b16 %v319
      %v424 = vunpack.c.l.b16 %v320
      %v425 = vunpack.c.h.b16 %v320
      %v426 = vunpack.c.l.b16 %v321
      %v427 = vunpack.c.h.b16 %v321
      %v428 = vunpack.c.l.b16 %v322
      %v429 = vunpack.c.h.b16 %v322
      %v430 = vunpack.c.l.b16 %v323
      %v431 = vunpack.c.h.b16 %v323
      %v432 = vpack.c.b16 %v402, %v400
      %v433 = vpack.c.b16 %v403, %v401
      %v434 = vpack.c.b16 %v406, %v404
      %v435 = vpack.c.b16 %v407, %v405
      %v436 = vpack.c.b16 %v410, %v408
      %v437 = vpack.c.b16 %v411, %v409
      %v438 = vpack.c.b16 %v414, %v412
      %v439 = vpack.c.b16 %v415, %v413
      %v440 = vpack.c.b16 %v418, %v416
      %v441 = vpack.c.b16 %v419, %v417
      %v442 = vpack.c.b16 %v422, %v420
      %v443 = vpack.c.b16 %v423, %v421
      %v444 = vpack.c.b16 %v426, %v424
      %v445 = vpack.c.b16 %v427, %v425
      %v446 = vpack.c.b16 %v430, %v428
      %v447 = vpack.c.b16 %v431, %v429
      %464 = vmatprep.subr.bf16.mxu0 %v433
      %465 = vmatpush1.bf16.msra.mxu0 %v432
      %466 = vmatprep.subr.bf16.mxu0 %v435
      %467 = vmatpush1.bf16.msra.mxu0 %v434
      %468 = vmatprep.subr.bf16.mxu0 %v437
      %469 = vmatpush1.bf16.msra.mxu0 %v436
      %470 = vmatprep.subr.bf16.mxu0 %v439
      %471 = vmatpush1.bf16.msra.mxu0 %v438
      %472 = vmatprep.subr.bf16.mxu0 %v441
      %473 = vmatpush1.bf16.msra.mxu0 %v440
      %474 = vmatprep.subr.bf16.mxu0 %v443
      %475 = vmatpush1.bf16.msra.mxu0 %v442
      %476 = vmatprep.subr.bf16.mxu0 %v445
      %477 = vmatpush1.bf16.msra.mxu0 %v444
      %478 = vmatprep.subr.bf16.mxu0 %v447
      %479 = vmatpush1.bf16.msra.mxu0 %v446
      %480 = vmatprep.subr.bf16.mxu0 0
      %481 = vmatpush1.bf16.msra.mxu0 0
      %482 = vmatprep.subr.bf16.mxu0 0
      %483 = vmatpush1.bf16.msra.mxu0 0
      %484 = vmatprep.subr.bf16.mxu0 0
      %485 = vmatpush1.bf16.msra.mxu0 0
      %486 = vmatprep.subr.bf16.mxu0 0
      %487 = vmatpush1.bf16.msra.mxu0 0
      %488 = vmatprep.subr.bf16.mxu0 0
      %489 = vmatpush1.bf16.msra.mxu0 0
      %490 = vmatprep.subr.bf16.mxu0 0
      %491 = vmatpush1.bf16.msra.mxu0 0
      %492 = vmatprep.subr.bf16.mxu0 0
      %493 = vmatpush1.bf16.msra.mxu0 0
      %494 = vmatprep.subr.bf16.mxu0 0
      %495 = vmatpush1.bf16.msra.mxu0 0
      %496 = vmatprep.mubr.bf16.mxu0 0
      %497 = vmatmul.mubr.bf16.gmra.mrb[0].mxu0 %v368
      %v498 = vpop.f32.mrb[0].mxu0
      %v499 = vadd.f32 %v329, %v498
      %v500 = vpop.f32.mrb[0].mxu0
      %v501 = vadd.f32 %v333, %v500
      %v502 = vpop.f32.mrb[0].mxu0
      %v503 = vadd.f32 %v329, %v502
      %v504 = vpop.f32.mrb[0].mxu0
      %v505 = vadd.f32 %v333, %v504
      %506 = vmatprep.mubr.bf16.mxu0 0
      %507 = vmatmul.mubr.bf16.gmra.mrb[0].mxu0 %v369
      %v508 = vpop.f32.mrb[0].mxu0
      %v509 = vadd.f32 %v329, %v508
      %v510 = vpop.f32.mrb[0].mxu0
      %v511 = vadd.f32 %v333, %v510
      %v512 = vpop.f32.mrb[0].mxu0
      %v513 = vadd.f32 %v329, %v512
      %v514 = vpop.f32.mrb[0].mxu0
      %v515 = vadd.f32 %v333, %v514
      %516 = vmatprep.mubr.bf16.mxu0 0
      %517 = vmatmul.mubr.bf16.gmra.mrb[0].mxu0 %v370
      %v518 = vpop.f32.mrb[0].mxu0
      %v519 = vadd.f32 %v329, %v518
      %v520 = vpop.f32.mrb[0].mxu0
      %v521 = vadd.f32 %v333, %v520
      %v522 = vpop.f32.mrb[0].mxu0
      %v523 = vadd.f32 %v329, %v522
      %v524 = vpop.f32.mrb[0].mxu0
      %v525 = vadd.f32 %v333, %v524
      %526 = vmatprep.mubr.bf16.mxu0 0
      %527 = vmatmul.mubr.bf16.gmra.mrb[0].mxu0 %v371
      %v528 = vpop.f32.mrb[0].mxu0
      %v529 = vadd.f32 %v329, %v528
      %v530 = vpop.f32.mrb[0].mxu0
      %v531 = vadd.f32 %v333, %v530
      %v532 = vpop.f32.mrb[0].mxu0
      %v533 = vadd.f32 %v329, %v532
      %v534 = vpop.f32.mrb[0].mxu0
      %v535 = vadd.f32 %v333, %v534
      %536 = vmatprep.mubr.bf16.mxu0 0
      %537 = vmatmul.mubr.bf16.gmra.mrb[0].mxu0 %v372
      %v538 = vpop.f32.mrb[0].mxu0
      %v539 = vadd.f32 %v329, %v538
      %v540 = vpop.f32.mrb[0].mxu0
      %v541 = vadd.f32 %v333, %v540
      %v542 = vpop.f32.mrb[0].mxu0
      %v543 = vadd.f32 %v329, %v542
      %v544 = vpop.f32.mrb[0].mxu0
      %v545 = vadd.f32 %v333, %v544
      %546 = vmatprep.mubr.bf16.mxu0 0
      %547 = vmatmul.mubr.bf16.gmra.mrb[0].mxu0 %v373
      %v548 = vpop.f32.mrb[0].mxu0
      %v549 = vadd.f32 %v329, %v548
      %v550 = vpop.f32.mrb[0].mxu0
      %v551 = vadd.f32 %v333, %v550
      %v552 = vpop.f32.mrb[0].mxu0
      %v553 = vadd.f32 %v329, %v552
      %v554 = vpop.f32.mrb[0].mxu0
      %v555 = vadd.f32 %v333, %v554
      %556 = vmatprep.mubr.bf16.mxu0 0
      %557 = vmatmul.mubr.bf16.gmra.mrb[0].mxu0 %v374
      %v558 = vpop.f32.mrb[0].mxu0
      %v559 = vadd.f32 %v329, %v558
      %v560 = vpop.f32.mrb[0].mxu0
      %v561 = vadd.f32 %v333, %v560
      %v562 = vpop.f32.mrb[0].mxu0
      %v563 = vadd.f32 %v329, %v562
      %v564 = vpop.f32.mrb[0].mxu0
      %v565 = vadd.f32 %v333, %v564
      %566 = vmatprep.mubr.bf16.mxu0 0
      %567 = vmatmul.mubr.bf16.gmra.mrb[0].mxu0 %v375
      %v568 = vpop.f32.mrb[0].mxu0
      %v569 = vadd.f32 %v329, %v568
      %v570 = vpop.f32.mrb[0].mxu0
      %v571 = vadd.f32 %v333, %v570
      %v572 = vpop.f32.mrb[0].mxu0
      %v573 = vadd.f32 %v329, %v572
      %v574 = vpop.f32.mrb[0].mxu0
      %v575 = vadd.f32 %v333, %v574
      %576 = vdwg.mxu0
      %v577 = vpack.c.bf16 %v503, %v499
      %v578 = vpack.c.bf16 %v505, %v501
      %v579 = vpack.c.bf16 %v513, %v509
      %v580 = vpack.c.bf16 %v515, %v511
      %v581 = vpack.c.bf16 %v523, %v519
      %v582 = vpack.c.bf16 %v525, %v521
      %v583 = vpack.c.bf16 %v533, %v529
      %v584 = vpack.c.bf16 %v535, %v531
      %v585 = vpack.c.bf16 %v543, %v539
      %v586 = vpack.c.bf16 %v545, %v541
      %v587 = vpack.c.bf16 %v553, %v549
      %v588 = vpack.c.bf16 %v555, %v551
      %v589 = vpack.c.bf16 %v563, %v559
      %v590 = vpack.c.bf16 %v565, %v561
      %v591 = vpack.c.bf16 %v573, %v569
      %v592 = vpack.c.bf16 %v575, %v571
      %593 = vst [vmem:[#allocation2] sm:$0xff] %v577
      %594 = vst [vmem:[#allocation2 + $0x8] sm:$0xff] %v578
      %595 = vst [vmem:[#allocation2 + $0x10] sm:$0xff] %v579
      %596 = vst [vmem:[#allocation2 + $0x18] sm:$0xff] %v580
      %597 = vst [vmem:[#allocation2 + $0x20] sm:$0xff] %v581
      %598 = vst [vmem:[#allocation2 + $0x28] sm:$0xff] %v582
      %599 = vst [vmem:[#allocation2 + $0x30] sm:$0xff] %v583
      %600 = vst [vmem:[#allocation2 + $0x38] sm:$0xff] %v584
      %601 = vst [vmem:[#allocation2 + $0x40] sm:$0xff] %v585
      %602 = vst [vmem:[#allocation2 + $0x48] sm:$0xff] %v586
      %603 = vst [vmem:[#allocation2 + $0x50] sm:$0xff] %v587
      %604 = vst [vmem:[#allocation2 + $0x58] sm:$0xff] %v588
      %605 = vst [vmem:[#allocation2 + $0x60] sm:$0xff] %v589
      %606 = vst [vmem:[#allocation2 + $0x68] sm:$0xff] %v590
      %607 = vst [vmem:[#allocation2 + $0x70] sm:$0xff] %v591
      %608 = vst [vmem:[#allocation2 + $0x78] sm:$0xff] %v592
      %v609 = vld [vmem:[#allocation2] sm:$0xff]
      %v610 = vld [vmem:[#allocation2 + $0x10] sm:$0xff]
      %v611 = vld [vmem:[#allocation2 + $0x20] sm:$0xff]
      %v612 = vld [vmem:[#allocation2 + $0x30] sm:$0xff]
      %v613 = vld [vmem:[#allocation2 + $0x40] sm:$0xff]
      %v614 = vld [vmem:[#allocation2 + $0x50] sm:$0xff]
      %v615 = vld [vmem:[#allocation2 + $0x60] sm:$0xff]
      %v616 = vld [vmem:[#allocation2 + $0x70] sm:$0xff]
      %v633 = vunpack.c.l.b16 %v292
      %v634 = vunpack.c.l.b16 %v293
      %v635 = vunpack.c.l.b16 %v294
      %v636 = vunpack.c.l.b16 %v295
      %v637 = vunpack.c.l.b16 %v296
      %v638 = vunpack.c.l.b16 %v297
      %v639 = vunpack.c.l.b16 %v298
      %v640 = vunpack.c.l.b16 %v299
      %v641 = vunpack.c.l.b16 %v300
      %v642 = vunpack.c.l.b16 %v301
      %v643 = vunpack.c.l.b16 %v302
      %v644 = vunpack.c.l.b16 %v303
      %v645 = vunpack.c.l.b16 %v304
      %v646 = vunpack.c.l.b16 %v305
      %v647 = vunpack.c.l.b16 %v306
      %v648 = vunpack.c.l.b16 %v307
      %v649 = vpack.c.b16 %v634, %v633
      %v650 = vpack.c.b16 %v636, %v635
      %v651 = vpack.c.b16 %v638, %v637
      %v652 = vpack.c.b16 %v640, %v639
      %v653 = vpack.c.b16 %v642, %v641
      %v654 = vpack.c.b16 %v644, %v643
      %v655 = vpack.c.b16 %v646, %v645
      %v656 = vpack.c.b16 %v648, %v647
      %665 = vmatprep.subr.bf16.mxu0 0
      %666 = vmatpush1.bf16.xpose.msra.mxu0 %v649
      %667 = vmatprep.subr.bf16.mxu0 0
      %668 = vmatpush1.bf16.xpose.msra.mxu0 %v650
      %669 = vmatprep.subr.bf16.mxu0 0
      %670 = vmatpush1.bf16.xpose.msra.mxu0 %v651
      %671 = vmatprep.subr.bf16.mxu0 0
      %672 = vmatpush1.bf16.xpose.msra.mxu0 %v652
      %673 = vmatprep.subr.bf16.mxu0 0
      %674 = vmatpush1.bf16.xpose.msra.mxu0 %v653
      %675 = vmatprep.subr.bf16.mxu0 0
      %676 = vmatpush1.bf16.xpose.msra.mxu0 %v654
      %677 = vmatprep.subr.bf16.mxu0 0
      %678 = vmatpush1.bf16.xpose.msra.mxu0 %v655
      %679 = vmatprep.subr.bf16.mxu0 0
      %680 = vmatpush1.bf16.xpose.msra.mxu0 %v656
      %681 = vmatprep.subr.bf16.mxu0 0
      %682 = vmatpush1.bf16.xpose.msra.mxu0 0
      %683 = vmatprep.subr.bf16.mxu0 0
      %684 = vmatpush1.bf16.xpose.msra.mxu0 0
      %685 = vmatprep.subr.bf16.mxu0 0
      %686 = vmatpush1.bf16.xpose.msra.mxu0 0
      %687 = vmatprep.subr.bf16.mxu0 0
      %688 = vmatpush1.bf16.xpose.msra.mxu0 0
      %689 = vmatprep.subr.bf16.mxu0 0
      %690 = vmatpush1.bf16.xpose.msra.mxu0 0
      %691 = vmatprep.subr.bf16.mxu0 0
      %692 = vmatpush1.bf16.xpose.msra.mxu0 0
      %693 = vmatprep.subr.bf16.mxu0 0
      %694 = vmatpush1.bf16.xpose.msra.mxu0 0
      %695 = vmatprep.subr.bf16.mxu0 0
      %696 = vmatpush1.bf16.xpose.msra.mxu0 0
      %697 = vmatprep.mubr.bf16.mxu0 0
      %698 = vmatmul.mubr.bf16.gmra.mrb[0].mxu0 %v609
      %v699 = vpop.f32.mrb[0].mxu0
      %v700 = vadd.f32 0.0, %v699
      %v701 = vpop.f32.mrb[0].mxu0
      %v702 = vpop.f32.mrb[0].mxu0
      %v703 = vadd.f32 0.0, %v702
      %v704 = vpop.f32.mrb[0].mxu0
      %705 = vmatprep.mubr.bf16.mxu0 0
      %706 = vmatmul.mubr.bf16.gmra.mrb[0].mxu0 %v610
      %v707 = vpop.f32.mrb[0].mxu0
      %v708 = vadd.f32 0.0, %v707
      %v709 = vpop.f32.mrb[0].mxu0
      %v710 = vpop.f32.mrb[0].mxu0
      %v711 = vadd.f32 0.0, %v710
      %v712 = vpop.f32.mrb[0].mxu0
      %713 = vmatprep.mubr.bf16.mxu0 0
      %714 = vmatmul.mubr.bf16.gmra.mrb[0].mxu0 %v611
      %v715 = vpop.f32.mrb[0].mxu0
      %v716 = vadd.f32 0.0, %v715
      %v717 = vpop.f32.mrb[0].mxu0
      %v718 = vpop.f32.mrb[0].mxu0
      %v719 = vadd.f32 0.0, %v718
      %v720 = vpop.f32.mrb[0].mxu0
      %721 = vmatprep.mubr.bf16.mxu0 0
      %722 = vmatmul.mubr.bf16.gmra.mrb[0].mxu0 %v612
      %v723 = vpop.f32.mrb[0].mxu0
      %v724 = vadd.f32 0.0, %v723
      %v725 = vpop.f32.mrb[0].mxu0
      %v726 = vpop.f32.mrb[0].mxu0
      %v727 = vadd.f32 0.0, %v726
      %v728 = vpop.f32.mrb[0].mxu0
      %729 = vmatprep.mubr.bf16.mxu0 0
      %730 = vmatmul.mubr.bf16.gmra.mrb[0].mxu0 %v613
      %v731 = vpop.f32.mrb[0].mxu0
      %v732 = vadd.f32 0.0, %v731
      %v733 = vpop.f32.mrb[0].mxu0
      %v734 = vpop.f32.mrb[0].mxu0
      %v735 = vadd.f32 0.0, %v734
      %v736 = vpop.f32.mrb[0].mxu0
      %737 = vmatprep.mubr.bf16.mxu0 0
      %738 = vmatmul.mubr.bf16.gmra.mrb[0].mxu0 %v614
      %v739 = vpop.f32.mrb[0].mxu0
      %v740 = vadd.f32 0.0, %v739
      %v741 = vpop.f32.mrb[0].mxu0
      %v742 = vpop.f32.mrb[0].mxu0
      %v743 = vadd.f32 0.0, %v742
      %v744 = vpop.f32.mrb[0].mxu0
      %745 = vmatprep.mubr.bf16.mxu0 0
      %746 = vmatmul.mubr.bf16.gmra.mrb[0].mxu0 %v615
      %v747 = vpop.f32.mrb[0].mxu0
      %v748 = vadd.f32 0.0, %v747
      %v749 = vpop.f32.mrb[0].mxu0
      %v750 = vpop.f32.mrb[0].mxu0
      %v751 = vadd.f32 0.0, %v750
      %v752 = vpop.f32.mrb[0].mxu0
      %753 = vmatprep.mubr.bf16.mxu0 0
      %754 = vmatmul.mubr.bf16.gmra.mrb[0].mxu0 %v616
      %v755 = vpop.f32.mrb[0].mxu0
      %v756 = vadd.f32 0.0, %v755
      %v757 = vpop.f32.mrb[0].mxu0
      %v758 = vpop.f32.mrb[0].mxu0
      %v759 = vadd.f32 0.0, %v758
      %v760 = vpop.f32.mrb[0].mxu0
      %761 = vdwg.mxu0
      %v762 = vpack.c.bf16 %v703, %v700
      %v763 = vpack.c.bf16 %v711, %v708
      %v764 = vpack.c.bf16 %v719, %v716
      %v765 = vpack.c.bf16 %v727, %v724
      %v766 = vpack.c.bf16 %v735, %v732
      %v767 = vpack.c.bf16 %v743, %v740
      %v768 = vpack.c.bf16 %v751, %v748
      %v769 = vpack.c.bf16 %v759, %v756
      %770 = vmatprep.subr.bf16.mxu0 0
      %771 = vmatpush1.bf16.xpose.msra.mxu0 %v609
      %772 = vmatprep.subr.bf16.mxu0 0
      %773 = vmatpush1.bf16.xpose.msra.mxu0 %v610
      %774 = vmatprep.subr.bf16.mxu0 0
      %775 = vmatpush1.bf16.xpose.msra.mxu0 %v611
      %776 = vmatprep.subr.bf16.mxu0 0
      %777 = vmatpush1.bf16.xpose.msra.mxu0 %v612
      %778 = vmatprep.subr.bf16.mxu0 0
      %779 = vmatpush1.bf16.xpose.msra.mxu0 %v613
      %780 = vmatprep.subr.bf16.mxu0 0
      %781 = vmatpush1.bf16.xpose.msra.mxu0 %v614
      %782 = vmatprep.subr.bf16.mxu0 0
      %783 = vmatpush1.bf16.xpose.msra.mxu0 %v615
      %784 = vmatprep.subr.bf16.mxu0 0
      %785 = vmatpush1.bf16.xpose.msra.mxu0 %v616
      %786 = vmatprep.subr.bf16.mxu0 0
      %787 = vmatpush1.bf16.xpose.msra.mxu0 0
      %788 = vmatprep.subr.bf16.mxu0 0
      %789 = vmatpush1.bf16.xpose.msra.mxu0 0
      %790 = vmatprep.subr.bf16.mxu0 0
      %791 = vmatpush1.bf16.xpose.msra.mxu0 0
      %792 = vmatprep.subr.bf16.mxu0 0
      %793 = vmatpush1.bf16.xpose.msra.mxu0 0
      %794 = vmatprep.subr.bf16.mxu0 0
      %795 = vmatpush1.bf16.xpose.msra.mxu0 0
      %796 = vmatprep.subr.bf16.mxu0 0
      %797 = vmatpush1.bf16.xpose.msra.mxu0 0
      %798 = vmatprep.subr.bf16.mxu0 0
      %799 = vmatpush1.bf16.xpose.msra.mxu0 0
      %800 = vmatprep.subr.bf16.mxu0 0
      %801 = vmatpush1.bf16.xpose.msra.mxu0 0
      %802 = vmatprep.mubr.bf16.mxu0 0
      %803 = vmatmul.mubr.bf16.gmra.mrb[0].mxu0 %v762
      %v804 = vpop.f32.mrb[0].mxu0
      %v805 = vadd.f32 0.0, %v804
      %v806 = vpop.f32.mrb[0].mxu0
      %v807 = vpop.f32.mrb[0].mxu0
      %v808 = vadd.f32 0.0, %v807
      %v809 = vpop.f32.mrb[0].mxu0
      %810 = vmatprep.mubr.bf16.mxu0 0
      %811 = vmatmul.mubr.bf16.gmra.mrb[0].mxu0 %v763
      %v812 = vpop.f32.mrb[0].mxu0
      %v813 = vadd.f32 0.0, %v812
      %v814 = vpop.f32.mrb[0].mxu0
      %v815 = vpop.f32.mrb[0].mxu0
      %v816 = vadd.f32 0.0, %v815
      %v817 = vpop.f32.mrb[0].mxu0
      %818 = vmatprep.mubr.bf16.mxu0 0
      %819 = vmatmul.mubr.bf16.gmra.mrb[0].mxu0 %v764
      %v820 = vpop.f32.mrb[0].mxu0
      %v821 = vadd.f32 0.0, %v820
      %v822 = vpop.f32.mrb[0].mxu0
      %v823 = vpop.f32.mrb[0].mxu0
      %v824 = vadd.f32 0.0, %v823
      %v825 = vpop.f32.mrb[0].mxu0
      %826 = vmatprep.mubr.bf16.mxu0 0
      %827 = vmatmul.mubr.bf16.gmra.mrb[0].mxu0 %v765
      %v828 = vpop.f32.mrb[0].mxu0
      %v829 = vadd.f32 0.0, %v828
      %v830 = vpop.f32.mrb[0].mxu0
      %v831 = vpop.f32.mrb[0].mxu0
      %v832 = vadd.f32 0.0, %v831
      %v833 = vpop.f32.mrb[0].mxu0
      %834 = vmatprep.mubr.bf16.mxu0 0
      %835 = vmatmul.mubr.bf16.gmra.mrb[0].mxu0 %v766
      %v836 = vpop.f32.mrb[0].mxu0
      %v837 = vadd.f32 0.0, %v836
      %v838 = vpop.f32.mrb[0].mxu0
      %v839 = vpop.f32.mrb[0].mxu0
      %v840 = vadd.f32 0.0, %v839
      %v841 = vpop.f32.mrb[0].mxu0
      %842 = vmatprep.mubr.bf16.mxu0 0
      %843 = vmatmul.mubr.bf16.gmra.mrb[0].mxu0 %v767
      %v844 = vpop.f32.mrb[0].mxu0
      %v845 = vadd.f32 0.0, %v844
      %v846 = vpop.f32.mrb[0].mxu0
      %v847 = vpop.f32.mrb[0].mxu0
      %v848 = vadd.f32 0.0, %v847
      %v849 = vpop.f32.mrb[0].mxu0
      %850 = vmatprep.mubr.bf16.mxu0 0
      %851 = vmatmul.mubr.bf16.gmra.mrb[0].mxu0 %v768
      %v852 = vpop.f32.mrb[0].mxu0
      %v853 = vadd.f32 0.0, %v852
      %v854 = vpop.f32.mrb[0].mxu0
      %v855 = vpop.f32.mrb[0].mxu0
      %v856 = vadd.f32 0.0, %v855
      %v857 = vpop.f32.mrb[0].mxu0
      %858 = vmatprep.mubr.bf16.mxu0 0
      %859 = vmatmul.mubr.bf16.gmra.mrb[0].mxu0 %v769
      %v860 = vpop.f32.mrb[0].mxu0
      %v861 = vadd.f32 0.0, %v860
      %v862 = vpop.f32.mrb[0].mxu0
      %v863 = vpop.f32.mrb[0].mxu0
      %v864 = vadd.f32 0.0, %v863
      %v865 = vpop.f32.mrb[0].mxu0
      %866 = vdwg.mxu0
      %v867 = vsel %vm275, %v805, -1e+30
      %v868 = vsel %vm275, %v808, -1e+30
      %v869 = vsel %vm275, %v813, -1e+30
      %v870 = vsel %vm275, %v816, -1e+30
      %v871 = vsel %vm275, %v821, -1e+30
      %v872 = vsel %vm275, %v824, -1e+30
      %v873 = vsel %vm275, %v829, -1e+30
      %v874 = vsel %vm275, %v832, -1e+30
      %v875 = vsel %vm275, %v837, -1e+30
      %v876 = vsel %vm275, %v840, -1e+30
      %v877 = vsel %vm275, %v845, -1e+30
      %v878 = vsel %vm275, %v848, -1e+30
      %v879 = vsel %vm275, %v853, -1e+30
      %v880 = vsel %vm275, %v856, -1e+30
      %v881 = vsel %vm275, %v861, -1e+30
      %v882 = vsel %vm275, %v864, -1e+30
      %883 = vmax.xlane.f32.xlu0 %v867
      %v884 = vpop.xlane.xlu0 %883
      %885 = vmax.xlane.f32.xlu0 %v868
      %v886 = vpop.xlane.xlu0 %885
      %887 = vmax.xlane.f32.xlu0 %v869
      %v888 = vpop.xlane.xlu0 %887
      %889 = vmax.xlane.f32.xlu0 %v870
      %v890 = vpop.xlane.xlu0 %889
      %891 = vmax.xlane.f32.xlu0 %v871
      %v892 = vpop.xlane.xlu0 %891
      %893 = vmax.xlane.f32.xlu0 %v872
      %v894 = vpop.xlane.xlu0 %893
      %895 = vmax.xlane.f32.xlu0 %v873
      %v896 = vpop.xlane.xlu0 %895
      %897 = vmax.xlane.f32.xlu0 %v874
      %v898 = vpop.xlane.xlu0 %897
      %899 = vmax.xlane.f32.xlu0 %v875
      %v900 = vpop.xlane.xlu0 %899
      %901 = vmax.xlane.f32.xlu0 %v876
      %v902 = vpop.xlane.xlu0 %901
      %903 = vmax.xlane.f32.xlu0 %v877
      %v904 = vpop.xlane.xlu0 %903
      %905 = vmax.xlane.f32.xlu0 %v878
      %v906 = vpop.xlane.xlu0 %905
      %907 = vmax.xlane.f32.xlu0 %v879
      %v908 = vpop.xlane.xlu0 %907
      %909 = vmax.xlane.f32.xlu0 %v880
      %v910 = vpop.xlane.xlu0 %909
      %911 = vmax.xlane.f32.xlu0 %v881
      %v912 = vpop.xlane.xlu0 %911
      %913 = vmax.xlane.f32.xlu0 %v882
      %v914 = vpop.xlane.xlu0 %913
      %v915 = vsub.f32 %v867, %v884
      %v916 = vsub.f32 %v868, %v886
      %v917 = vsub.f32 %v869, %v888
      %v918 = vsub.f32 %v870, %v890
      %v919 = vsub.f32 %v871, %v892
      %v920 = vsub.f32 %v872, %v894
      %v921 = vsub.f32 %v873, %v896
      %v922 = vsub.f32 %v874, %v898
      %v923 = vsub.f32 %v875, %v900
      %v924 = vsub.f32 %v876, %v902
      %v925 = vsub.f32 %v877, %v904
      %v926 = vsub.f32 %v878, %v906
      %v927 = vsub.f32 %v879, %v908
      %v928 = vsub.f32 %v880, %v910
      %v929 = vsub.f32 %v881, %v912
      %v930 = vsub.f32 %v882, %v914
      %v931 = vmul.f32 %v915, 1.442695
      %v932 = vpow.pop %v931
      %v933 = vmul.f32 %v916, 1.442695
      %v934 = vpow.pop %v933
      %v935 = vmul.f32 %v917, 1.442695
      %v936 = vpow.pop %v935
      %v937 = vmul.f32 %v918, 1.442695
      %v938 = vpow.pop %v937
      %v939 = vmul.f32 %v919, 1.442695
      %v940 = vpow.pop %v939
      %v941 = vmul.f32 %v920, 1.442695
      %v942 = vpow.pop %v941
      %v943 = vmul.f32 %v921, 1.442695
      %v944 = vpow.pop %v943
      %v945 = vmul.f32 %v922, 1.442695
      %v946 = vpow.pop %v945
      %v947 = vmul.f32 %v923, 1.442695
      %v948 = vpow.pop %v947
      %v949 = vmul.f32 %v924, 1.442695
      %v950 = vpow.pop %v949
      %v951 = vmul.f32 %v925, 1.442695
      %v952 = vpow.pop %v951
      %v953 = vmul.f32 %v926, 1.442695
      %v954 = vpow.pop %v953
      %v955 = vmul.f32 %v927, 1.442695
      %v956 = vpow.pop %v955
      %v957 = vmul.f32 %v928, 1.442695
      %v958 = vpow.pop %v957
      %v959 = vmul.f32 %v929, 1.442695
      %v960 = vpow.pop %v959
      %v961 = vmul.f32 %v930, 1.442695
      %v962 = vpow.pop %v961
      %v963 = vsel %vm275, %v932, 0.0
      %v964 = vsel %vm275, %v934, 0.0
      %v965 = vsel %vm275, %v936, 0.0
      %v966 = vsel %vm275, %v938, 0.0
      %v967 = vsel %vm275, %v940, 0.0
      %v968 = vsel %vm275, %v942, 0.0
      %v969 = vsel %vm275, %v944, 0.0
      %v970 = vsel %vm275, %v946, 0.0
      %v971 = vsel %vm275, %v948, 0.0
      %v972 = vsel %vm275, %v950, 0.0
      %v973 = vsel %vm275, %v952, 0.0
      %v974 = vsel %vm275, %v954, 0.0
      %v975 = vsel %vm275, %v956, 0.0
      %v976 = vsel %vm275, %v958, 0.0
      %v977 = vsel %vm275, %v960, 0.0
      %v978 = vsel %vm275, %v962, 0.0
      %979 = vadd.xlane.f32.xlu0 %v963
      %v980 = vpop.xlane.xlu0 %979
      %981 = vadd.xlane.f32.xlu0 %v964
      %v982 = vpop.xlane.xlu0 %981
      %983 = vadd.xlane.f32.xlu0 %v965
      %v984 = vpop.xlane.xlu0 %983
      %985 = vadd.xlane.f32.xlu0 %v966
      %v986 = vpop.xlane.xlu0 %985
      %987 = vadd.xlane.f32.xlu0 %v967
      %v988 = vpop.xlane.xlu0 %987
      %989 = vadd.xlane.f32.xlu0 %v968
      %v990 = vpop.xlane.xlu0 %989
      %991 = vadd.xlane.f32.xlu0 %v969
      %v992 = vpop.xlane.xlu0 %991
      %993 = vadd.xlane.f32.xlu0 %v970
      %v994 = vpop.xlane.xlu0 %993
      %995 = vadd.xlane.f32.xlu0 %v971
      %v996 = vpop.xlane.xlu0 %995
      %997 = vadd.xlane.f32.xlu0 %v972
      %v998 = vpop.xlane.xlu0 %997
      %999 = vadd.xlane.f32.xlu0 %v973
      %v1000 = vpop.xlane.xlu0 %999
      %1001 = vadd.xlane.f32.xlu0 %v974
      %v1002 = vpop.xlane.xlu0 %1001
      %1003 = vadd.xlane.f32.xlu0 %v975
      %v1004 = vpop.xlane.xlu0 %1003
      %1005 = vadd.xlane.f32.xlu0 %v976
      %v1006 = vpop.xlane.xlu0 %1005
      %1007 = vadd.xlane.f32.xlu0 %v977
      %v1008 = vpop.xlane.xlu0 %1007
      %1009 = vadd.xlane.f32.xlu0 %v978
      %v1010 = vpop.xlane.xlu0 %1009
      %v1011 = vmul.f32 %v980, 2.0
      %v1012 = vmul.f32 %v982, 2.0
      %v1013 = vmul.f32 %v984, 2.0
      %v1014 = vmul.f32 %v986, 2.0
      %v1015 = vmul.f32 %v988, 2.0
      %v1016 = vmul.f32 %v990, 2.0
      %v1017 = vmul.f32 %v992, 2.0
      %v1018 = vmul.f32 %v994, 2.0
      %v1019 = vmul.f32 %v996, 2.0
      %v1020 = vmul.f32 %v998, 2.0
      %v1021 = vmul.f32 %v1000, 2.0
      %v1022 = vmul.f32 %v1002, 2.0
      %v1023 = vmul.f32 %v1004, 2.0
      %v1024 = vmul.f32 %v1006, 2.0
      %v1025 = vmul.f32 %v1008, 2.0
      %v1026 = vmul.f32 %v1010, 2.0
      %v1027 = vrcp.pop %v1011
      %v1028 = vrcp.pop %v1012
      %v1029 = vrcp.pop %v1013
      %v1030 = vrcp.pop %v1014
      %v1031 = vrcp.pop %v1015
      %v1032 = vrcp.pop %v1016
      %v1033 = vrcp.pop %v1017
      %v1034 = vrcp.pop %v1018
      %v1035 = vrcp.pop %v1019
      %v1036 = vrcp.pop %v1020
      %v1037 = vrcp.pop %v1021
      %v1038 = vrcp.pop %v1022
      %v1039 = vrcp.pop %v1023
      %v1040 = vrcp.pop %v1024
      %v1041 = vrcp.pop %v1025
      %v1042 = vrcp.pop %v1026
      %v1043 = vmul.f32 %v963, %v1027
      %v1044 = vmul.f32 %v964, %v1028
      %v1045 = vmul.f32 %v965, %v1029
      %v1046 = vmul.f32 %v966, %v1030
      %v1047 = vmul.f32 %v967, %v1031
      %v1048 = vmul.f32 %v968, %v1032
      %v1049 = vmul.f32 %v969, %v1033
      %v1050 = vmul.f32 %v970, %v1034
      %v1051 = vmul.f32 %v971, %v1035
      %v1052 = vmul.f32 %v972, %v1036
      %v1053 = vmul.f32 %v973, %v1037
      %v1054 = vmul.f32 %v974, %v1038
      %v1055 = vmul.f32 %v975, %v1039
      %v1056 = vmul.f32 %v976, %v1040
      %v1057 = vmul.f32 %v977, %v1041
      %v1058 = vmul.f32 %v978, %v1042
      %v1059 = vadd.f32 %v1043, 0.0
      %v1060 = vadd.f32 %v1044, 0.0
      %v1061 = vadd.f32 %v1045, 0.0
      %v1062 = vadd.f32 %v1046, 0.0
      %v1063 = vadd.f32 %v1047, 0.0
      %v1064 = vadd.f32 %v1048, 0.0
      %v1065 = vadd.f32 %v1049, 0.0
      %v1066 = vadd.f32 %v1050, 0.0
      %v1067 = vadd.f32 %v1051, 0.0
      %v1068 = vadd.f32 %v1052, 0.0
      %v1069 = vadd.f32 %v1053, 0.0
      %v1070 = vadd.f32 %v1054, 0.0
      %v1071 = vadd.f32 %v1055, 0.0
      %v1072 = vadd.f32 %v1056, 0.0
      %v1073 = vadd.f32 %v1057, 0.0
      %v1074 = vadd.f32 %v1058, 0.0
      %v1075 = vld [vmem:[#allocation2 + $0x8] sm:$0xff]
      %v1076 = vld [vmem:[#allocation2 + $0x18] sm:$0xff]
      %v1077 = vld [vmem:[#allocation2 + $0x28] sm:$0xff]
      %v1078 = vld [vmem:[#allocation2 + $0x38] sm:$0xff]
      %v1079 = vld [vmem:[#allocation2 + $0x48] sm:$0xff]
      %v1080 = vld [vmem:[#allocation2 + $0x58] sm:$0xff]
      %v1081 = vld [vmem:[#allocation2 + $0x68] sm:$0xff]
      %v1082 = vld [vmem:[#allocation2 + $0x78] sm:$0xff]
      %1083 = vmatprep.subr.bf16.mxu0 0
      %1084 = vmatpush1.bf16.xpose.msra.mxu0 %v649
      %1085 = vmatprep.subr.bf16.mxu0 0
      %1086 = vmatpush1.bf16.xpose.msra.mxu0 %v650
      %1087 = vmatprep.subr.bf16.mxu0 0
      %1088 = vmatpush1.bf16.xpose.msra.mxu0 %v651
      %1089 = vmatprep.subr.bf16.mxu0 0
      %1090 = vmatpush1.bf16.xpose.msra.mxu0 %v652
      %1091 = vmatprep.subr.bf16.mxu0 0
      %1092 = vmatpush1.bf16.xpose.msra.mxu0 %v653
      %1093 = vmatprep.subr.bf16.mxu0 0
      %1094 = vmatpush1.bf16.xpose.msra.mxu0 %v654
      %1095 = vmatprep.subr.bf16.mxu0 0
      %1096 = vmatpush1.bf16.xpose.msra.mxu0 %v655
      %1097 = vmatprep.subr.bf16.mxu0 0
      %1098 = vmatpush1.bf16.xpose.msra.mxu0 %v656
      %1099 = vmatprep.subr.bf16.mxu0 0
      %1100 = vmatpush1.bf16.xpose.msra.mxu0 0
      %1101 = vmatprep.subr.bf16.mxu0 0
      %1102 = vmatpush1.bf16.xpose.msra.mxu0 0
      %1103 = vmatprep.subr.bf16.mxu0 0
      %1104 = vmatpush1.bf16.xpose.msra.mxu0 0
      %1105 = vmatprep.subr.bf16.mxu0 0
      %1106 = vmatpush1.bf16.xpose.msra.mxu0 0
      %1107 = vmatprep.subr.bf16.mxu0 0
      %1108 = vmatpush1.bf16.xpose.msra.mxu0 0
      %1109 = vmatprep.subr.bf16.mxu0 0
      %1110 = vmatpush1.bf16.xpose.msra.mxu0 0
      %1111 = vmatprep.subr.bf16.mxu0 0
      %1112 = vmatpush1.bf16.xpose.msra.mxu0 0
      %1113 = vmatprep.subr.bf16.mxu0 0
      %1114 = vmatpush1.bf16.xpose.msra.mxu0 0
      %1115 = vmatprep.mubr.bf16.mxu0 0
      %1116 = vmatmul.mubr.bf16.gmra.mrb[0].mxu0 %v1075
      %v1117 = vpop.f32.mrb[0].mxu0
      %v1118 = vadd.f32 0.0, %v1117
      %v1119 = vpop.f32.mrb[0].mxu0
      %v1120 = vpop.f32.mrb[0].mxu0
      %v1121 = vadd.f32 0.0, %v1120
      %v1122 = vpop.f32.mrb[0].mxu0
      %1123 = vmatprep.mubr.bf16.mxu0 0
      %1124 = vmatmul.mubr.bf16.gmra.mrb[0].mxu0 %v1076
      %v1125 = vpop.f32.mrb[0].mxu0
      %v1126 = vadd.f32 0.0, %v1125
      %v1127 = vpop.f32.mrb[0].mxu0
      %v1128 = vpop.f32.mrb[0].mxu0
      %v1129 = vadd.f32 0.0, %v1128
      %v1130 = vpop.f32.mrb[0].mxu0
      %1131 = vmatprep.mubr.bf16.mxu0 0
      %1132 = vmatmul.mubr.bf16.gmra.mrb[0].mxu0 %v1077
      %v1133 = vpop.f32.mrb[0].mxu0
      %v1134 = vadd.f32 0.0, %v1133
      %v1135 = vpop.f32.mrb[0].mxu0
      %v1136 = vpop.f32.mrb[0].mxu0
      %v1137 = vadd.f32 0.0, %v1136
      %v1138 = vpop.f32.mrb[0].mxu0
      %1139 = vmatprep.mubr.bf16.mxu0 0
      %1140 = vmatmul.mubr.bf16.gmra.mrb[0].mxu0 %v1078
      %v1141 = vpop.f32.mrb[0].mxu0
      %v1142 = vadd.f32 0.0, %v1141
      %v1143 = vpop.f32.mrb[0].mxu0
      %v1144 = vpop.f32.mrb[0].mxu0
      %v1145 = vadd.f32 0.0, %v1144
      %v1146 = vpop.f32.mrb[0].mxu0
      %1147 = vmatprep.mubr.bf16.mxu0 0
      %1148 = vmatmul.mubr.bf16.gmra.mrb[0].mxu0 %v1079
      %v1149 = vpop.f32.mrb[0].mxu0
      %v1150 = vadd.f32 0.0, %v1149
      %v1151 = vpop.f32.mrb[0].mxu0
      %v1152 = vpop.f32.mrb[0].mxu0
      %v1153 = vadd.f32 0.0, %v1152
      %v1154 = vpop.f32.mrb[0].mxu0
      %1155 = vmatprep.mubr.bf16.mxu0 0
      %1156 = vmatmul.mubr.bf16.gmra.mrb[0].mxu0 %v1080
      %v1157 = vpop.f32.mrb[0].mxu0
      %v1158 = vadd.f32 0.0, %v1157
      %v1159 = vpop.f32.mrb[0].mxu0
      %v1160 = vpop.f32.mrb[0].mxu0
      %v1161 = vadd.f32 0.0, %v1160
      %v1162 = vpop.f32.mrb[0].mxu0
      %1163 = vmatprep.mubr.bf16.mxu0 0
      %1164 = vmatmul.mubr.bf16.gmra.mrb[0].mxu0 %v1081
      %v1165 = vpop.f32.mrb[0].mxu0
      %v1166 = vadd.f32 0.0, %v1165
      %v1167 = vpop.f32.mrb[0].mxu0
      %v1168 = vpop.f32.mrb[0].mxu0
      %v1169 = vadd.f32 0.0, %v1168
      %v1170 = vpop.f32.mrb[0].mxu0
      %1171 = vmatprep.mubr.bf16.mxu0 0
      %1172 = vmatmul.mubr.bf16.gmra.mrb[0].mxu0 %v1082
      %v1173 = vpop.f32.mrb[0].mxu0
      %v1174 = vadd.f32 0.0, %v1173
      %v1175 = vpop.f32.mrb[0].mxu0
      %v1176 = vpop.f32.mrb[0].mxu0
      %v1177 = vadd.f32 0.0, %v1176
      %v1178 = vpop.f32.mrb[0].mxu0
      %1179 = vdwg.mxu0
      %v1180 = vpack.c.bf16 %v1121, %v1118
      %v1181 = vpack.c.bf16 %v1129, %v1126
      %v1182 = vpack.c.bf16 %v1137, %v1134
      %v1183 = vpack.c.bf16 %v1145, %v1142
      %v1184 = vpack.c.bf16 %v1153, %v1150
      %v1185 = vpack.c.bf16 %v1161, %v1158
      %v1186 = vpack.c.bf16 %v1169, %v1166
      %v1187 = vpack.c.bf16 %v1177, %v1174
      %1188 = vmatprep.subr.bf16.mxu0 0
      %1189 = vmatpush1.bf16.xpose.msra.mxu0 %v1075
      %1190 = vmatprep.subr.bf16.mxu0 0
      %1191 = vmatpush1.bf16.xpose.msra.mxu0 %v1076
      %1192 = vmatprep.subr.bf16.mxu0 0
      %1193 = vmatpush1.bf16.xpose.msra.mxu0 %v1077
      %1194 = vmatprep.subr.bf16.mxu0 0
      %1195 = vmatpush1.bf16.xpose.msra.mxu0 %v1078
      %1196 = vmatprep.subr.bf16.mxu0 0
      %1197 = vmatpush1.bf16.xpose.msra.mxu0 %v1079
      %1198 = vmatprep.subr.bf16.mxu0 0
      %1199 = vmatpush1.bf16.xpose.msra.mxu0 %v1080
      %1200 = vmatprep.subr.bf16.mxu0 0
      %1201 = vmatpush1.bf16.xpose.msra.mxu0 %v1081
      %1202 = vmatprep.subr.bf16.mxu0 0
      %1203 = vmatpush1.bf16.xpose.msra.mxu0 %v1082
      %1204 = vmatprep.subr.bf16.mxu0 0
      %1205 = vmatpush1.bf16.xpose.msra.mxu0 0
      %1206 = vmatprep.subr.bf16.mxu0 0
      %1207 = vmatpush1.bf16.xpose.msra.mxu0 0
      %1208 = vmatprep.subr.bf16.mxu0 0
      %1209 = vmatpush1.bf16.xpose.msra.mxu0 0
      %1210 = vmatprep.subr.bf16.mxu0 0
      %1211 = vmatpush1.bf16.xpose.msra.mxu0 0
      %1212 = vmatprep.subr.bf16.mxu0 0
      %1213 = vmatpush1.bf16.xpose.msra.mxu0 0
      %1214 = vmatprep.subr.bf16.mxu0 0
      %1215 = vmatpush1.bf16.xpose.msra.mxu0 0
      %1216 = vmatprep.subr.bf16.mxu0 0
      %1217 = vmatpush1.bf16.xpose.msra.mxu0 0
      %1218 = vmatprep.subr.bf16.mxu0 0
      %1219 = vmatpush1.bf16.xpose.msra.mxu0 0
      %1220 = vmatprep.mubr.bf16.mxu0 0
      %1221 = vmatmul.mubr.bf16.gmra.mrb[0].mxu0 %v1180
      %v1222 = vpop.f32.mrb[0].mxu0
      %v1223 = vadd.f32 0.0, %v1222
      %v1224 = vpop.f32.mrb[0].mxu0
      %v1225 = vpop.f32.mrb[0].mxu0
      %v1226 = vadd.f32 0.0, %v1225
      %v1227 = vpop.f32.mrb[0].mxu0
      %1228 = vmatprep.mubr.bf16.mxu0 0
      %1229 = vmatmul.mubr.bf16.gmra.mrb[0].mxu0 %v1181
      %v1230 = vpop.f32.mrb[0].mxu0
      %v1231 = vadd.f32 0.0, %v1230
      %v1232 = vpop.f32.mrb[0].mxu0
      %v1233 = vpop.f32.mrb[0].mxu0
      %v1234 = vadd.f32 0.0, %v1233
      %v1235 = vpop.f32.mrb[0].mxu0
      %1236 = vmatprep.mubr.bf16.mxu0 0
      %1237 = vmatmul.mubr.bf16.gmra.mrb[0].mxu0 %v1182
      %v1238 = vpop.f32.mrb[0].mxu0
      %v1239 = vadd.f32 0.0, %v1238
      %v1240 = vpop.f32.mrb[0].mxu0
      %v1241 = vpop.f32.mrb[0].mxu0
      %v1242 = vadd.f32 0.0, %v1241
      %v1243 = vpop.f32.mrb[0].mxu0
      %1244 = vmatprep.mubr.bf16.mxu0 0
      %1245 = vmatmul.mubr.bf16.gmra.mrb[0].mxu0 %v1183
      %v1246 = vpop.f32.mrb[0].mxu0
      %v1247 = vadd.f32 0.0, %v1246
      %v1248 = vpop.f32.mrb[0].mxu0
      %v1249 = vpop.f32.mrb[0].mxu0
      %v1250 = vadd.f32 0.0, %v1249
      %v1251 = vpop.f32.mrb[0].mxu0
      %1252 = vmatprep.mubr.bf16.mxu0 0
      %1253 = vmatmul.mubr.bf16.gmra.mrb[0].mxu0 %v1184
      %v1254 = vpop.f32.mrb[0].mxu0
      %v1255 = vadd.f32 0.0, %v1254
      %v1256 = vpop.f32.mrb[0].mxu0
      %v1257 = vpop.f32.mrb[0].mxu0
      %v1258 = vadd.f32 0.0, %v1257
      %v1259 = vpop.f32.mrb[0].mxu0
      %1260 = vmatprep.mubr.bf16.mxu0 0
      %1261 = vmatmul.mubr.bf16.gmra.mrb[0].mxu0 %v1185
      %v1262 = vpop.f32.mrb[0].mxu0
      %v1263 = vadd.f32 0.0, %v1262
      %v1264 = vpop.f32.mrb[0].mxu0
      %v1265 = vpop.f32.mrb[0].mxu0
      %v1266 = vadd.f32 0.0, %v1265
      %v1267 = vpop.f32.mrb[0].mxu0
      %1268 = vmatprep.mubr.bf16.mxu0 0
      %1269 = vmatmul.mubr.bf16.gmra.mrb[0].mxu0 %v1186
      %v1270 = vpop.f32.mrb[0].mxu0
      %v1271 = vadd.f32 0.0, %v1270
      %v1272 = vpop.f32.mrb[0].mxu0
      %v1273 = vpop.f32.mrb[0].mxu0
      %v1274 = vadd.f32 0.0, %v1273
      %v1275 = vpop.f32.mrb[0].mxu0
      %1276 = vmatprep.mubr.bf16.mxu0 0
      %1277 = vmatmul.mubr.bf16.gmra.mrb[0].mxu0 %v1187
      %v1278 = vpop.f32.mrb[0].mxu0
      %v1279 = vadd.f32 0.0, %v1278
      %v1280 = vpop.f32.mrb[0].mxu0
      %v1281 = vpop.f32.mrb[0].mxu0
      %v1282 = vadd.f32 0.0, %v1281
      %v1283 = vpop.f32.mrb[0].mxu0
      %1284 = vdwg.mxu0
      %v1285 = vsel %vm275, %v1223, -1e+30
      %v1286 = vsel %vm275, %v1226, -1e+30
      %v1287 = vsel %vm275, %v1231, -1e+30
      %v1288 = vsel %vm275, %v1234, -1e+30
      %v1289 = vsel %vm275, %v1239, -1e+30
      %v1290 = vsel %vm275, %v1242, -1e+30
      %v1291 = vsel %vm275, %v1247, -1e+30
      %v1292 = vsel %vm275, %v1250, -1e+30
      %v1293 = vsel %vm275, %v1255, -1e+30
      %v1294 = vsel %vm275, %v1258, -1e+30
      %v1295 = vsel %vm275, %v1263, -1e+30
      %v1296 = vsel %vm275, %v1266, -1e+30
      %v1297 = vsel %vm275, %v1271, -1e+30
      %v1298 = vsel %vm275, %v1274, -1e+30
      %v1299 = vsel %vm275, %v1279, -1e+30
      %v1300 = vsel %vm275, %v1282, -1e+30
      %1301 = vmax.xlane.f32.xlu0 %v1285
      %v1302 = vpop.xlane.xlu0 %1301
      %1303 = vmax.xlane.f32.xlu0 %v1286
      %v1304 = vpop.xlane.xlu0 %1303
      %1305 = vmax.xlane.f32.xlu0 %v1287
      %v1306 = vpop.xlane.xlu0 %1305
      %1307 = vmax.xlane.f32.xlu0 %v1288
      %v1308 = vpop.xlane.xlu0 %1307
      %1309 = vmax.xlane.f32.xlu0 %v1289
      %v1310 = vpop.xlane.xlu0 %1309
      %1311 = vmax.xlane.f32.xlu0 %v1290
      %v1312 = vpop.xlane.xlu0 %1311
      %1313 = vmax.xlane.f32.xlu0 %v1291
      %v1314 = vpop.xlane.xlu0 %1313
      %1315 = vmax.xlane.f32.xlu0 %v1292
      %v1316 = vpop.xlane.xlu0 %1315
      %1317 = vmax.xlane.f32.xlu0 %v1293
      %v1318 = vpop.xlane.xlu0 %1317
      %1319 = vmax.xlane.f32.xlu0 %v1294
      %v1320 = vpop.xlane.xlu0 %1319
      %1321 = vmax.xlane.f32.xlu0 %v1295
      %v1322 = vpop.xlane.xlu0 %1321
      %1323 = vmax.xlane.f32.xlu0 %v1296
      %v1324 = vpop.xlane.xlu0 %1323
      %1325 = vmax.xlane.f32.xlu0 %v1297
      %v1326 = vpop.xlane.xlu0 %1325
      %1327 = vmax.xlane.f32.xlu0 %v1298
      %v1328 = vpop.xlane.xlu0 %1327
      %1329 = vmax.xlane.f32.xlu0 %v1299
      %v1330 = vpop.xlane.xlu0 %1329
      %1331 = vmax.xlane.f32.xlu0 %v1300
      %v1332 = vpop.xlane.xlu0 %1331
      %v1333 = vsub.f32 %v1285, %v1302
      %v1334 = vsub.f32 %v1286, %v1304
      %v1335 = vsub.f32 %v1287, %v1306
      %v1336 = vsub.f32 %v1288, %v1308
      %v1337 = vsub.f32 %v1289, %v1310
      %v1338 = vsub.f32 %v1290, %v1312
      %v1339 = vsub.f32 %v1291, %v1314
      %v1340 = vsub.f32 %v1292, %v1316
      %v1341 = vsub.f32 %v1293, %v1318
      %v1342 = vsub.f32 %v1294, %v1320
      %v1343 = vsub.f32 %v1295, %v1322
      %v1344 = vsub.f32 %v1296, %v1324
      %v1345 = vsub.f32 %v1297, %v1326
      %v1346 = vsub.f32 %v1298, %v1328
      %v1347 = vsub.f32 %v1299, %v1330
      %v1348 = vsub.f32 %v1300, %v1332
      %v1349 = vmul.f32 %v1333, 1.442695
      %v1350 = vpow.pop %v1349
      %v1351 = vmul.f32 %v1334, 1.442695
      %v1352 = vpow.pop %v1351
      %v1353 = vmul.f32 %v1335, 1.442695
      %v1354 = vpow.pop %v1353
      %v1355 = vmul.f32 %v1336, 1.442695
      %v1356 = vpow.pop %v1355
      %v1357 = vmul.f32 %v1337, 1.442695
      %v1358 = vpow.pop %v1357
      %v1359 = vmul.f32 %v1338, 1.442695
      %v1360 = vpow.pop %v1359
      %v1361 = vmul.f32 %v1339, 1.442695
      %v1362 = vpow.pop %v1361
      %v1363 = vmul.f32 %v1340, 1.442695
      %v1364 = vpow.pop %v1363
      %v1365 = vmul.f32 %v1341, 1.442695
      %v1366 = vpow.pop %v1365
      %v1367 = vmul.f32 %v1342, 1.442695
      %v1368 = vpow.pop %v1367
      %v1369 = vmul.f32 %v1343, 1.442695
      %v1370 = vpow.pop %v1369
      %v1371 = vmul.f32 %v1344, 1.442695
      %v1372 = vpow.pop %v1371
      %v1373 = vmul.f32 %v1345, 1.442695
      %v1374 = vpow.pop %v1373
      %v1375 = vmul.f32 %v1346, 1.442695
      %v1376 = vpow.pop %v1375
      %v1377 = vmul.f32 %v1347, 1.442695
      %v1378 = vpow.pop %v1377
      %v1379 = vmul.f32 %v1348, 1.442695
      %v1380 = vpow.pop %v1379
      %v1381 = vsel %vm275, %v1350, 0.0
      %v1382 = vsel %vm275, %v1352, 0.0
      %v1383 = vsel %vm275, %v1354, 0.0
      %v1384 = vsel %vm275, %v1356, 0.0
      %v1385 = vsel %vm275, %v1358, 0.0
      %v1386 = vsel %vm275, %v1360, 0.0
      %v1387 = vsel %vm275, %v1362, 0.0
      %v1388 = vsel %vm275, %v1364, 0.0
      %v1389 = vsel %vm275, %v1366, 0.0
      %v1390 = vsel %vm275, %v1368, 0.0
      %v1391 = vsel %vm275, %v1370, 0.0
      %v1392 = vsel %vm275, %v1372, 0.0
      %v1393 = vsel %vm275, %v1374, 0.0
      %v1394 = vsel %vm275, %v1376, 0.0
      %v1395 = vsel %vm275, %v1378, 0.0
      %v1396 = vsel %vm275, %v1380, 0.0
      %1397 = vadd.xlane.f32.xlu0 %v1381
      %v1398 = vpop.xlane.xlu0 %1397
      %1399 = vadd.xlane.f32.xlu0 %v1382
      %v1400 = vpop.xlane.xlu0 %1399
      %1401 = vadd.xlane.f32.xlu0 %v1383
      %v1402 = vpop.xlane.xlu0 %1401
      %1403 = vadd.xlane.f32.xlu0 %v1384
      %v1404 = vpop.xlane.xlu0 %1403
      %1405 = vadd.xlane.f32.xlu0 %v1385
      %v1406 = vpop.xlane.xlu0 %1405
      %1407 = vadd.xlane.f32.xlu0 %v1386
      %v1408 = vpop.xlane.xlu0 %1407
      %1409 = vadd.xlane.f32.xlu0 %v1387
      %v1410 = vpop.xlane.xlu0 %1409
      %1411 = vadd.xlane.f32.xlu0 %v1388
      %v1412 = vpop.xlane.xlu0 %1411
      %1413 = vadd.xlane.f32.xlu0 %v1389
      %v1414 = vpop.xlane.xlu0 %1413
      %1415 = vadd.xlane.f32.xlu0 %v1390
      %v1416 = vpop.xlane.xlu0 %1415
      %1417 = vadd.xlane.f32.xlu0 %v1391
      %v1418 = vpop.xlane.xlu0 %1417
      %1419 = vadd.xlane.f32.xlu0 %v1392
      %v1420 = vpop.xlane.xlu0 %1419
      %1421 = vadd.xlane.f32.xlu0 %v1393
      %v1422 = vpop.xlane.xlu0 %1421
      %1423 = vadd.xlane.f32.xlu0 %v1394
      %v1424 = vpop.xlane.xlu0 %1423
      %1425 = vadd.xlane.f32.xlu0 %v1395
      %v1426 = vpop.xlane.xlu0 %1425
      %1427 = vadd.xlane.f32.xlu0 %v1396
      %v1428 = vpop.xlane.xlu0 %1427
      %v1429 = vmul.f32 %v1398, 2.0
      %v1430 = vmul.f32 %v1400, 2.0
      %v1431 = vmul.f32 %v1402, 2.0
      %v1432 = vmul.f32 %v1404, 2.0
      %v1433 = vmul.f32 %v1406, 2.0
      %v1434 = vmul.f32 %v1408, 2.0
      %v1435 = vmul.f32 %v1410, 2.0
      %v1436 = vmul.f32 %v1412, 2.0
      %v1437 = vmul.f32 %v1414, 2.0
      %v1438 = vmul.f32 %v1416, 2.0
      %v1439 = vmul.f32 %v1418, 2.0
      %v1440 = vmul.f32 %v1420, 2.0
      %v1441 = vmul.f32 %v1422, 2.0
      %v1442 = vmul.f32 %v1424, 2.0
      %v1443 = vmul.f32 %v1426, 2.0
      %v1444 = vmul.f32 %v1428, 2.0
      %v1445 = vrcp.pop %v1429
      %v1446 = vrcp.pop %v1430
      %v1447 = vrcp.pop %v1431
      %v1448 = vrcp.pop %v1432
      %v1449 = vrcp.pop %v1433
      %v1450 = vrcp.pop %v1434
      %v1451 = vrcp.pop %v1435
      %v1452 = vrcp.pop %v1436
      %v1453 = vrcp.pop %v1437
      %v1454 = vrcp.pop %v1438
      %v1455 = vrcp.pop %v1439
      %v1456 = vrcp.pop %v1440
      %v1457 = vrcp.pop %v1441
      %v1458 = vrcp.pop %v1442
      %v1459 = vrcp.pop %v1443
      %v1460 = vrcp.pop %v1444
      %v1461 = vmul.f32 %v1381, %v1445
      %v1462 = vmul.f32 %v1382, %v1446
      %v1463 = vmul.f32 %v1383, %v1447
      %v1464 = vmul.f32 %v1384, %v1448
      %v1465 = vmul.f32 %v1385, %v1449
      %v1466 = vmul.f32 %v1386, %v1450
      %v1467 = vmul.f32 %v1387, %v1451
      %v1468 = vmul.f32 %v1388, %v1452
      %v1469 = vmul.f32 %v1389, %v1453
      %v1470 = vmul.f32 %v1390, %v1454
      %v1471 = vmul.f32 %v1391, %v1455
      %v1472 = vmul.f32 %v1392, %v1456
      %v1473 = vmul.f32 %v1393, %v1457
      %v1474 = vmul.f32 %v1394, %v1458
      %v1475 = vmul.f32 %v1395, %v1459
      %v1476 = vmul.f32 %v1396, %v1460
      %v1477 = vadd.f32 %v1059, %v1461
      %v1478 = vadd.f32 %v1060, %v1462
      %v1479 = vadd.f32 %v1061, %v1463
      %v1480 = vadd.f32 %v1062, %v1464
      %v1481 = vadd.f32 %v1063, %v1465
      %v1482 = vadd.f32 %v1064, %v1466
      %v1483 = vadd.f32 %v1065, %v1467
      %v1484 = vadd.f32 %v1066, %v1468
      %v1485 = vadd.f32 %v1067, %v1469
      %v1486 = vadd.f32 %v1068, %v1470
      %v1487 = vadd.f32 %v1069, %v1471
      %v1488 = vadd.f32 %v1070, %v1472
      %v1489 = vadd.f32 %v1071, %v1473
      %v1490 = vadd.f32 %v1072, %v1474
      %v1491 = vadd.f32 %v1073, %v1475
      %v1492 = vadd.f32 %v1074, %v1476
      %v1493 = vpack.c.bf16 %v1478, %v1477
      %v1494 = vpack.c.bf16 %v1480, %v1479
      %v1495 = vpack.c.bf16 %v1482, %v1481
      %v1496 = vpack.c.bf16 %v1484, %v1483
      %v1497 = vpack.c.bf16 %v1486, %v1485
      %v1498 = vpack.c.bf16 %v1488, %v1487
      %v1499 = vpack.c.bf16 %v1490, %v1489
      %v1500 = vpack.c.bf16 %v1492, %v1491
      %1501 = vmatprep.subr.bf16.mxu0 0
      %1502 = vmatpush1.bf16.msra.mxu0 %v368
      %1503 = vmatprep.subr.bf16.mxu0 0
      %1504 = vmatpush1.bf16.msra.mxu0 %v369
      %1505 = vmatprep.subr.bf16.mxu0 0
      %1506 = vmatpush1.bf16.msra.mxu0 %v370
      %1507 = vmatprep.subr.bf16.mxu0 0
      %1508 = vmatpush1.bf16.msra.mxu0 %v371
      %1509 = vmatprep.subr.bf16.mxu0 0
      %1510 = vmatpush1.bf16.msra.mxu0 %v372
      %1511 = vmatprep.subr.bf16.mxu0 0
      %1512 = vmatpush1.bf16.msra.mxu0 %v373
      %1513 = vmatprep.subr.bf16.mxu0 0
      %1514 = vmatpush1.bf16.msra.mxu0 %v374
      %1515 = vmatprep.subr.bf16.mxu0 0
      %1516 = vmatpush1.bf16.msra.mxu0 %v375
      %1517 = vmatprep.subr.bf16.mxu0 0
      %1518 = vmatpush1.bf16.msra.mxu0 0
      %1519 = vmatprep.subr.bf16.mxu0 0
      %1520 = vmatpush1.bf16.msra.mxu0 0
      %1521 = vmatprep.subr.bf16.mxu0 0
      %1522 = vmatpush1.bf16.msra.mxu0 0
      %1523 = vmatprep.subr.bf16.mxu0 0
      %1524 = vmatpush1.bf16.msra.mxu0 0
      %1525 = vmatprep.subr.bf16.mxu0 0
      %1526 = vmatpush1.bf16.msra.mxu0 0
      %1527 = vmatprep.subr.bf16.mxu0 0
      %1528 = vmatpush1.bf16.msra.mxu0 0
      %1529 = vmatprep.subr.bf16.mxu0 0
      %1530 = vmatpush1.bf16.msra.mxu0 0
      %1531 = vmatprep.subr.bf16.mxu0 0
      %1532 = vmatpush1.bf16.msra.mxu0 0
      %1533 = vmatprep.mubr.bf16.mxu0 0
      %1534 = vmatmul.mubr.bf16.gmra.mrb[0].mxu0 %v1493
      %v1535 = vpop.f32.mrb[0].mxu0
      %v1536 = vadd.f32 0.0, %v1535
      %v1537 = vpop.f32.mrb[0].mxu0
      %v1538 = vpop.f32.mrb[0].mxu0
      %v1539 = vadd.f32 0.0, %v1538
      %v1540 = vpop.f32.mrb[0].mxu0
      %1541 = vmatprep.mubr.bf16.mxu0 0
      %1542 = vmatmul.mubr.bf16.gmra.mrb[0].mxu0 %v1494
      %v1543 = vpop.f32.mrb[0].mxu0
      %v1544 = vadd.f32 0.0, %v1543
      %v1545 = vpop.f32.mrb[0].mxu0
      %v1546 = vpop.f32.mrb[0].mxu0
      %v1547 = vadd.f32 0.0, %v1546
      %v1548 = vpop.f32.mrb[0].mxu0
      %1549 = vmatprep.mubr.bf16.mxu0 0
      %1550 = vmatmul.mubr.bf16.gmra.mrb[0].mxu0 %v1495
      %v1551 = vpop.f32.mrb[0].mxu0
      %v1552 = vadd.f32 0.0, %v1551
      %v1553 = vpop.f32.mrb[0].mxu0
      %v1554 = vpop.f32.mrb[0].mxu0
      %v1555 = vadd.f32 0.0, %v1554
      %v1556 = vpop.f32.mrb[0].mxu0
      %1557 = vmatprep.mubr.bf16.mxu0 0
      %1558 = vmatmul.mubr.bf16.gmra.mrb[0].mxu0 %v1496
      %v1559 = vpop.f32.mrb[0].mxu0
      %v1560 = vadd.f32 0.0, %v1559
      %v1561 = vpop.f32.mrb[0].mxu0
      %v1562 = vpop.f32.mrb[0].mxu0
      %v1563 = vadd.f32 0.0, %v1562
      %v1564 = vpop.f32.mrb[0].mxu0
      %1565 = vmatprep.mubr.bf16.mxu0 0
      %1566 = vmatmul.mubr.bf16.gmra.mrb[0].mxu0 %v1497
      %v1567 = vpop.f32.mrb[0].mxu0
      %v1568 = vadd.f32 0.0, %v1567
      %v1569 = vpop.f32.mrb[0].mxu0
      %v1570 = vpop.f32.mrb[0].mxu0
      %v1571 = vadd.f32 0.0, %v1570
      %v1572 = vpop.f32.mrb[0].mxu0
      %1573 = vmatprep.mubr.bf16.mxu0 0
      %1574 = vmatmul.mubr.bf16.gmra.mrb[0].mxu0 %v1498
      %v1575 = vpop.f32.mrb[0].mxu0
      %v1576 = vadd.f32 0.0, %v1575
      %v1577 = vpop.f32.mrb[0].mxu0
      %v1578 = vpop.f32.mrb[0].mxu0
      %v1579 = vadd.f32 0.0, %v1578
      %v1580 = vpop.f32.mrb[0].mxu0
      %1581 = vmatprep.mubr.bf16.mxu0 0
      %1582 = vmatmul.mubr.bf16.gmra.mrb[0].mxu0 %v1499
      %v1583 = vpop.f32.mrb[0].mxu0
      %v1584 = vadd.f32 0.0, %v1583
      %v1585 = vpop.f32.mrb[0].mxu0
      %v1586 = vpop.f32.mrb[0].mxu0
      %v1587 = vadd.f32 0.0, %v1586
      %v1588 = vpop.f32.mrb[0].mxu0
      %1589 = vmatprep.mubr.bf16.mxu0 0
      %1590 = vmatmul.mubr.bf16.gmra.mrb[0].mxu0 %v1500
      %v1591 = vpop.f32.mrb[0].mxu0
      %v1592 = vadd.f32 0.0, %v1591
      %v1593 = vpop.f32.mrb[0].mxu0
      %v1594 = vpop.f32.mrb[0].mxu0
      %v1595 = vadd.f32 0.0, %v1594
      %v1596 = vpop.f32.mrb[0].mxu0
      %1597 = vdwg.mxu0
      %v1598 = vpack.c.bf16 %v1539, %v1536
      %v1599 = vpack.c.bf16 %v1547, %v1544
      %v1600 = vpack.c.bf16 %v1555, %v1552
      %v1601 = vpack.c.bf16 %v1563, %v1560
      %v1602 = vpack.c.bf16 %v1571, %v1568
      %v1603 = vpack.c.bf16 %v1579, %v1576
      %v1604 = vpack.c.bf16 %v1587, %v1584
      %v1605 = vpack.c.bf16 %v1595, %v1592
      %v1606 = vld [vmem:[%s4] sm:$0xf]
      %v1607 = vld [vmem:[%s4 + $0x4] sm:$0xf]
      %v1608 = vld [vmem:[%s4 + $0x8] sm:$0xf]
      %v1609 = vld [vmem:[%s4 + $0xc] sm:$0xf]
      %v1610 = vld [vmem:[%s4 + $0x10] sm:$0xf]
      %v1611 = vld [vmem:[%s4 + $0x14] sm:$0xf]
      %v1612 = vld [vmem:[%s4 + $0x18] sm:$0xf]
      %v1613 = vld [vmem:[%s4 + $0x1c] sm:$0xf]
      %v1614 = vld [vmem:[%s4 + $0x20] sm:$0xf]
      %v1615 = vld [vmem:[%s4 + $0x24] sm:$0xf]
      %v1616 = vld [vmem:[%s4 + $0x28] sm:$0xf]
      %v1617 = vld [vmem:[%s4 + $0x2c] sm:$0xf]
      %v1618 = vld [vmem:[%s4 + $0x30] sm:$0xf]
      %v1619 = vld [vmem:[%s4 + $0x34] sm:$0xf]
      %v1620 = vld [vmem:[%s4 + $0x38] sm:$0xf]
      %v1621 = vld [vmem:[%s4 + $0x3c] sm:$0xf]
      %v1622 = vld [vmem:[%s5] sm:$0x1]
      %v1624 = vlaneseq
      %v1625 = vshrl.u32 %v1624, 7
      %v1626 = vsub.s32 0, %v1625
      %v1627 = vrot.slane %v1622, %v1626
      %v1645 = vunpack.c.l.b16 %v1606
      %v1646 = vunpack.c.l.b16 %v1607
      %v1647 = vunpack.c.l.b16 %v1608
      %v1648 = vunpack.c.l.b16 %v1609
      %v1649 = vunpack.c.l.b16 %v1610
      %v1650 = vunpack.c.l.b16 %v1611
      %v1651 = vunpack.c.l.b16 %v1612
      %v1652 = vunpack.c.l.b16 %v1613
      %v1653 = vunpack.c.l.b16 %v1614
      %v1654 = vunpack.c.l.b16 %v1615
      %v1655 = vunpack.c.l.b16 %v1616
      %v1656 = vunpack.c.l.b16 %v1617
      %v1657 = vunpack.c.l.b16 %v1618
      %v1658 = vunpack.c.l.b16 %v1619
      %v1659 = vunpack.c.l.b16 %v1620
      %v1660 = vunpack.c.l.b16 %v1621
      %v1661 = vpack.c.b16 %v1646, %v1645
      %v1662 = vpack.c.b16 %v1648, %v1647
      %v1663 = vpack.c.b16 %v1650, %v1649
      %v1664 = vpack.c.b16 %v1652, %v1651
      %v1665 = vpack.c.b16 %v1654, %v1653
      %v1666 = vpack.c.b16 %v1656, %v1655
      %v1667 = vpack.c.b16 %v1658, %v1657
      %v1668 = vpack.c.b16 %v1660, %v1659
      %1677 = vmatprep.subr.bf16.mxu0 0
      %1678 = vmatpush1.bf16.msra.mxu0 %v1661
      %1679 = vmatprep.subr.bf16.mxu0 0
      %1680 = vmatpush1.bf16.msra.mxu0 %v1662
      %1681 = vmatprep.subr.bf16.mxu0 0
      %1682 = vmatpush1.bf16.msra.mxu0 %v1663
      %1683 = vmatprep.subr.bf16.mxu0 0
      %1684 = vmatpush1.bf16.msra.mxu0 %v1664
      %1685 = vmatprep.subr.bf16.mxu0 0
      %1686 = vmatpush1.bf16.msra.mxu0 %v1665
      %1687 = vmatprep.subr.bf16.mxu0 0
      %1688 = vmatpush1.bf16.msra.mxu0 %v1666
      %1689 = vmatprep.subr.bf16.mxu0 0
      %1690 = vmatpush1.bf16.msra.mxu0 %v1667
      %1691 = vmatprep.subr.bf16.mxu0 0
      %1692 = vmatpush1.bf16.msra.mxu0 %v1668
      %1693 = vmatprep.subr.bf16.mxu0 0
      %1694 = vmatpush1.bf16.msra.mxu0 0
      %1695 = vmatprep.subr.bf16.mxu0 0
      %1696 = vmatpush1.bf16.msra.mxu0 0
      %1697 = vmatprep.subr.bf16.mxu0 0
      %1698 = vmatpush1.bf16.msra.mxu0 0
      %1699 = vmatprep.subr.bf16.mxu0 0
      %1700 = vmatpush1.bf16.msra.mxu0 0
      %1701 = vmatprep.subr.bf16.mxu0 0
      %1702 = vmatpush1.bf16.msra.mxu0 0
      %1703 = vmatprep.subr.bf16.mxu0 0
      %1704 = vmatpush1.bf16.msra.mxu0 0
      %1705 = vmatprep.subr.bf16.mxu0 0
      %1706 = vmatpush1.bf16.msra.mxu0 0
      %1707 = vmatprep.subr.bf16.mxu0 0
      %1708 = vmatpush1.bf16.msra.mxu0 0
      %1709 = vmatprep.mubr.bf16.mxu0 0
      %1710 = vmatmul.mubr.bf16.gmra.mrb[0].mxu0 %v1598
      %v1711 = vpop.f32.mrb[0].mxu0
      %v1712 = vadd.f32 %v1627, %v1711
      %v1713 = vpop.f32.mrb[0].mxu0
      %v1714 = vpop.f32.mrb[0].mxu0
      %v1715 = vadd.f32 %v1627, %v1714
      %v1716 = vpop.f32.mrb[0].mxu0
      %1717 = vmatprep.mubr.bf16.mxu0 0
      %1718 = vmatmul.mubr.bf16.gmra.mrb[0].mxu0 %v1599
      %v1719 = vpop.f32.mrb[0].mxu0
      %v1720 = vadd.f32 %v1627, %v1719
      %v1721 = vpop.f32.mrb[0].mxu0
      %v1722 = vpop.f32.mrb[0].mxu0
      %v1723 = vadd.f32 %v1627, %v1722
      %v1724 = vpop.f32.mrb[0].mxu0
      %1725 = vmatprep.mubr.bf16.mxu0 0
      %1726 = vmatmul.mubr.bf16.gmra.mrb[0].mxu0 %v1600
      %v1727 = vpop.f32.mrb[0].mxu0
      %v1728 = vadd.f32 %v1627, %v1727
      %v1729 = vpop.f32.mrb[0].mxu0
      %v1730 = vpop.f32.mrb[0].mxu0
      %v1731 = vadd.f32 %v1627, %v1730
      %v1732 = vpop.f32.mrb[0].mxu0
      %1733 = vmatprep.mubr.bf16.mxu0 0
      %1734 = vmatmul.mubr.bf16.gmra.mrb[0].mxu0 %v1601
      %v1735 = vpop.f32.mrb[0].mxu0
      %v1736 = vadd.f32 %v1627, %v1735
      %v1737 = vpop.f32.mrb[0].mxu0
      %v1738 = vpop.f32.mrb[0].mxu0
      %v1739 = vadd.f32 %v1627, %v1738
      %v1740 = vpop.f32.mrb[0].mxu0
      %1741 = vmatprep.mubr.bf16.mxu0 0
      %1742 = vmatmul.mubr.bf16.gmra.mrb[0].mxu0 %v1602
      %v1743 = vpop.f32.mrb[0].mxu0
      %v1744 = vadd.f32 %v1627, %v1743
      %v1745 = vpop.f32.mrb[0].mxu0
      %v1746 = vpop.f32.mrb[0].mxu0
      %v1747 = vadd.f32 %v1627, %v1746
      %v1748 = vpop.f32.mrb[0].mxu0
      %1749 = vmatprep.mubr.bf16.mxu0 0
      %1750 = vmatmul.mubr.bf16.gmra.mrb[0].mxu0 %v1603
      %v1751 = vpop.f32.mrb[0].mxu0
      %v1752 = vadd.f32 %v1627, %v1751
      %v1753 = vpop.f32.mrb[0].mxu0
      %v1754 = vpop.f32.mrb[0].mxu0
      %v1755 = vadd.f32 %v1627, %v1754
      %v1756 = vpop.f32.mrb[0].mxu0
      %1757 = vmatprep.mubr.bf16.mxu0 0
      %1758 = vmatmul.mubr.bf16.gmra.mrb[0].mxu0 %v1604
      %v1759 = vpop.f32.mrb[0].mxu0
      %v1760 = vadd.f32 %v1627, %v1759
      %v1761 = vpop.f32.mrb[0].mxu0
      %v1762 = vpop.f32.mrb[0].mxu0
      %v1763 = vadd.f32 %v1627, %v1762
      %v1764 = vpop.f32.mrb[0].mxu0
      %1765 = vmatprep.mubr.bf16.mxu0 0
      %1766 = vmatmul.mubr.bf16.gmra.mrb[0].mxu0 %v1605
      %v1767 = vpop.f32.mrb[0].mxu0
      %v1768 = vadd.f32 %v1627, %v1767
      %v1769 = vpop.f32.mrb[0].mxu0
      %v1770 = vpop.f32.mrb[0].mxu0
      %v1771 = vadd.f32 %v1627, %v1770
      %v1772 = vpop.f32.mrb[0].mxu0
      %1773 = vdwg.mxu0
      %v1774 = vmax.f32 %v1712, 0.0
      %v1775 = vmax.f32 %v1715, 0.0
      %v1776 = vmax.f32 %v1720, 0.0
      %v1777 = vmax.f32 %v1723, 0.0
      %v1778 = vmax.f32 %v1728, 0.0
      %v1779 = vmax.f32 %v1731, 0.0
      %v1780 = vmax.f32 %v1736, 0.0
      %v1781 = vmax.f32 %v1739, 0.0
      %v1782 = vmax.f32 %v1744, 0.0
      %v1783 = vmax.f32 %v1747, 0.0
      %v1784 = vmax.f32 %v1752, 0.0
      %v1785 = vmax.f32 %v1755, 0.0
      %v1786 = vmax.f32 %v1760, 0.0
      %v1787 = vmax.f32 %v1763, 0.0
      %v1788 = vmax.f32 %v1768, 0.0
      %v1789 = vmax.f32 %v1771, 0.0
      %1790 = vst [vmem:[%s271] sm:$0xff] %v1774
      %1791 = vst [vmem:[%s271 + $0x8] sm:$0xff] %v1775
      %1792 = vst [vmem:[%s271 + $0x10] sm:$0xff] %v1776
      %1793 = vst [vmem:[%s271 + $0x18] sm:$0xff] %v1777
      %1794 = vst [vmem:[%s271 + $0x20] sm:$0xff] %v1778
      %1795 = vst [vmem:[%s271 + $0x28] sm:$0xff] %v1779
      %1796 = vst [vmem:[%s271 + $0x30] sm:$0xff] %v1780
      %1797 = vst [vmem:[%s271 + $0x38] sm:$0xff] %v1781
      %1798 = vst [vmem:[%s271 + $0x40] sm:$0xff] %v1782
      %1799 = vst [vmem:[%s271 + $0x48] sm:$0xff] %v1783
      %1800 = vst [vmem:[%s271 + $0x50] sm:$0xff] %v1784
      %1801 = vst [vmem:[%s271 + $0x58] sm:$0xff] %v1785
      %1802 = vst [vmem:[%s271 + $0x60] sm:$0xff] %v1786
      %1803 = vst [vmem:[%s271 + $0x68] sm:$0xff] %v1787
      %1804 = vst [vmem:[%s271 + $0x70] sm:$0xff] %v1788
      %1805 = vst [vmem:[%s271 + $0x78] sm:$0xff] %v1789
      %p1806 = scmp.lt.s32.totalorder %s17, 1
      %s1807 = scalar_select %p1806, %s17, 1
      %s1808 = smul.addr %s1807, 16
      %s1809 = smul.addr %s1808, 8
      %s1810 = scalar_lea.vmem %s6, %s1809
      // Predicated region
      $region45: #{mgat_attention.1} parent=43 // pred_check
        %p1811 = pneg %p171
      $region46: #{mgat_attention.1} parent=43 // pred_check_branch
        %1813 = sbr.rel (%p1811) target = $region48
      $region47: #{mgat_attention.1} parent=43 // pred_region
        _
      $region48: #{mgat_attention.1} parent=43 // pred_fallthru
        _
    $region44: #{mgat_attention.1} parent=5 // pred_fallthru
      _
    %p1814 = scmp.le.s32.totalorder 2, %s12
    // Predicated region
    $region49: #{mgat_attention.1} parent=5 // pred_check
      %p1815 = pneg %p1814
    $region50: #{mgat_attention.1} parent=5 // pred_check_branch
      %1817 = sbr.rel (%p1815) target = $region52
    $region51: #{mgat_attention.1} parent=5 // pred_region
      %s1818 = ssub.s32 %s12, 2
      // Predicated region
      $region53: #{mgat_attention.1} parent=51 // pred_check
        %p1819 = pneg %p177
      $region54: #{mgat_attention.1} parent=51 // pred_check_branch
        %1821 = sbr.rel (%p1819) target = $region56
      $region55: #{mgat_attention.1} parent=51 // pred_region
        %p1822 = scmp.lt.s32.totalorder %s18, 1
        %s1823 = scalar_select %p1822, %s18, 1
        %s1824 = smul.addr %s1823, 16
        %s1825 = smul.addr %s1824, 8
        %s1826 = scalar_lea.vmem %s6, %s1825
      $region56: #{mgat_attention.1} parent=51 // pred_fallthru
        _
    $region52: #{mgat_attention.1} parent=5 // pred_fallthru
      _
  $region6: #{mgat_attention.1} parent=0 // loop_footer
    %s16 = sadd.s32 1, %s12
  $region7: #{mgat_attention.1} parent=0 // loop_footer_branch
    %11 = sbr.rel target = $region3
  $region8: #{mgat_attention.1} parent=0 // loop_exit
    _

</llo_original>
